<compile_context>
chip_gen: v7x
topology: tpu7x:2x2x1
jax: 0.10.0
libtpu: 0.0.40
codegen_flags: <defaults>
</compile_context>

<pallas_src>
import math

import jax
import jax.numpy as jnp
from jax import lax
from jax.experimental import pallas as pl
from jax.experimental.pallas import tpu as pltpu


# --------------------------- main LSTM kernel -------------------------------
def lstm_dir_kernel(x_ref, w_in_ref, b_in_ref, w_hh_ref, out_ref,
                    gx_ref, h_ref, c_ref):
    """One LSTM direction (grid axis 0), one time chunk (grid axis 1).

    x_ref   : (Tc*Bp, E)  time-major flat input chunk (already time-reversed
                          for the backward direction).
    w_in_ref: (E, 4H)     input->gates weight, gate column order [i | f | o | g]
    b_in_ref: (1, 4H)     fused bias (b_ih + b_hh), same column order
    w_hh_ref: (H, 4H)     hidden->gates weight (dense, per direction)
    out_ref : (Tc*Bp, H)  per-direction hidden outputs for this chunk
    gx_ref  : VMEM (Tc*Bp, 4H) scratch: x-projection for this chunk
    h_ref, c_ref : VMEM (Bp, H) state carried across chunks
    """
    H4 = w_in_ref.shape[1]
    H = H4 // 4
    Bp = h_ref.shape[0]
    Tc = x_ref.shape[0] // Bp

    # Chunk-local fused input projection for all Tc steps (one MXU pass, bias
    # folded in).  Off the per-step serial critical path.
    gx_ref[...] = (
        jnp.dot(x_ref[...], w_in_ref[...], preferred_element_type=jnp.float32)
        + b_in_ref[...])

    # Fresh state at the start of each direction's pass over the sequence.
    @pl.when(pl.program_id(1) == 0)
    def _():
        h_ref[...] = jnp.zeros_like(h_ref)
        c_ref[...] = jnp.zeros_like(c_ref)

    w_hh = w_hh_ref[...]                          # (H, 4H), dense — no zeros

    def step(t, carry):
        h, c = carry                              # (Bp, H) each
        r0 = pl.multiple_of(t * Bp, Bp)           # sublane-aligned row start
        gates = (jnp.dot(h, w_hh, preferred_element_type=jnp.float32)
                 + gx_ref[pl.ds(r0, Bp), :])      # (Bp, 4H), ONE contiguous load
        # sigmoid(x) = 0.5*tanh(x/2)+0.5: one EUP op/elem for the i,f,o gates.
        sio = 0.5 * jnp.tanh(0.5 * gates[:, 0:3 * H]) + 0.5
        g = jnp.tanh(gates[:, 3 * H:4 * H])
        c_new = sio[:, H:2 * H] * c + sio[:, 0:H] * g
        h_new = sio[:, 2 * H:3 * H] * jnp.tanh(c_new)
        out_ref[pl.ds(r0, Bp), :] = h_new         # full-width, offset-free store
        return h_new, c_new

    if Tc <= 16:
        unroll = True                             # short chunk: fully unroll
    elif Bp * H <= 8192:
        unroll = 4
    else:
        unroll = 2                                # large state: avoid vreg spill
    h_fin, c_fin = lax.fori_loop(0, Tc, step, (h_ref[...], c_ref[...]),
                                 unroll=unroll)
    h_ref[...] = h_fin
    c_ref[...] = c_fin


# --------------------------- final fc + tanh kernel --------------------------
def fc_tanh_kernel(hf_ref, hb_ref, wf_ref, wb_ref, b_ref, out_ref):
    out_ref[...] = jnp.tanh(
        jnp.dot(hf_ref[...], wf_ref[...], preferred_element_type=jnp.float32)
        + jnp.dot(hb_ref[...], wb_ref[...], preferred_element_type=jnp.float32)
        + b_ref[...])


# --------------------------- wrapper-side weight packing --------------------
def _pack_params(params):
    """Pre-transpose / fuse / gate-reorder PyTorch-layout weights (XLA side)."""
    H = params["whh_f"].shape[1]

    def split_gates(w):       # PyTorch LSTM row order: i, f, g, o
        return w[0:H], w[H:2 * H], w[2 * H:3 * H], w[3 * H:4 * H]

    def pack_dir(wih, whh, bih, bhh):
        ii, if_, ig, io = split_gates(wih)
        w_in = jnp.concatenate([ii, if_, io, ig], axis=0).T      # (E,4H) [i|f|o|g]
        hi, hf, hg, ho = split_gates(whh)
        w_hh = jnp.concatenate([hi, hf, ho, hg], axis=0).T       # (H,4H)
        bi, bf_, bg, bo = split_gates(bih + bhh)
        b_in = jnp.concatenate([bi, bf_, bo, bg]).reshape(1, 4 * H)
        return w_in, w_hh, b_in

    wi_f, whh_f, b_f = pack_dir(params["wih_f"], params["whh_f"],
                                params["bih_f"], params["bhh_f"])
    wi_b, whh_b, b_b = pack_dir(params["wih_b"], params["whh_b"],
                                params["bih_b"], params["bhh_b"])
    w_in = jnp.stack([wi_f, wi_b], axis=0)        # (2, E, 4H)
    w_hh = jnp.stack([whh_f, whh_b], axis=0)      # (2, H, 4H)
    b_in = jnp.stack([b_f, b_b], axis=0)          # (2, 1, 4H)

    wfc = params["wfc"]                           # (D, 2H)
    w_fc_f = wfc[:, 0:H].T                        # (H, D)
    w_fc_b = wfc[:, H:2 * H].T                    # (H, D)
    b_fc = params["bfc"].reshape(1, -1)           # (1, D)
    return w_in, w_hh, b_in, w_fc_f, w_fc_b, b_fc


# --------------------------- VMEM sizing helpers -----------------------------
def _vmem_capacity_bytes():
    try:
        cap = getattr(pltpu.get_tpu_info(), "vmem_capacity_bytes", None)
        if cap:
            return int(cap)
    except Exception:
        pass
    return 64 * 1024 * 1024      # conservative fallback (v7x per-core VMEM)


def _chunk_vmem_bytes(Tc, Bp, E, H):
    rows = Tc * Bp
    return 4 * (2 * rows * E                      # x chunk (double-buffered)
                + 2 * rows * H                    # out chunk (double-buffered)
                + rows * 4 * H                    # gx scratch
                + 2 * (E * 4 * H + 4 * H + H * 4 * H)   # weight/bias blocks
                + 2 * Bp * H)                     # carried h/c state


def _pick_chunk_len(T, Bp, E, H, budget_bytes):
    for tc in range(T, 0, -1):                    # largest divisor of T that fits
        if T % tc == 0 and _chunk_vmem_bytes(tc, Bp, E, H) <= budget_bytes:
            return tc
    return 1


# --------------------------- forward wrapper ---------------------------------
def encoder_forward(x, params, proj_dtype=jnp.float32):
    """x: (B, T, E) batch_first. Returns (outputs (B,T,2H), hidden (B,D))."""
    B, T, E = x.shape
    H = params["whh_f"].shape[1]
    D = params["wfc"].shape[0]
    Bp = max(8, -(-B // 8) * 8)                   # pad batch to sublane multiple

    w_in, w_hh, b_in, w_fc_f, w_fc_b, b_fc = _pack_params(params)

    # Time-major, batch-padded, flat (T*Bp, E); the backward direction gets a
    # time-reversed copy so both directions index gx/out with the SAME t.
    x_tm = jnp.transpose(x, (1, 0, 2))
    x_tm = jnp.pad(x_tm, ((0, 0), (0, Bp - B), (0, 0)))
    x_fwd = x_tm.reshape(T * Bp, E)
    x_bwd = x_tm[::-1].reshape(T * Bp, E)
    x_both = jnp.stack([x_fwd, x_bwd], axis=0).astype(proj_dtype)   # (2, T*Bp, E)
    w_in = w_in.astype(proj_dtype)

    cap = _vmem_capacity_bytes()
    Tc = _pick_chunk_len(T, Bp, E, H, int(0.6 * cap))
    num_chunks = T // Tc
    rows_c = Tc * Bp
    vmem_limit = int(min(max(int(1.25 * _chunk_vmem_bytes(Tc, Bp, E, H)),
                             8 * 1024 * 1024),
                         int(0.9 * cap)))

    out_both = pl.pallas_call(
        lstm_dir_kernel,
        grid=(2, num_chunks),                     # (direction, time chunk)
        in_specs=[
            pl.BlockSpec((None, rows_c, E), lambda d, i: (d, i, 0)),
            pl.BlockSpec((None, E, 4 * H), lambda d, i: (d, 0, 0)),
            pl.BlockSpec((None, 1, 4 * H), lambda d, i: (d, 0, 0)),
            pl.BlockSpec((None, H, 4 * H), lambda d, i: (d, 0, 0)),
        ],
        out_specs=pl.BlockSpec((None, rows_c, H), lambda d, i: (d, i, 0)),
        out_shape=jax.ShapeDtypeStruct((2, T * Bp, H), jnp.float32),
        scratch_shapes=[
            pltpu.VMEM((rows_c, 4 * H), jnp.float32),   # gx (chunk x-projection)
            pltpu.VMEM((Bp, H), jnp.float32),           # carried h
            pltpu.VMEM((Bp, H), jnp.float32),           # carried c
        ],
        compiler_params=pltpu.CompilerParams(
            dimension_semantics=("parallel", "arbitrary"),
            vmem_limit_bytes=vmem_limit),
    )(x_both, w_in, b_in, w_hh)

    out_f = out_both[0].reshape(T, Bp, H)          # natural time order
    out_b_rev = out_both[1].reshape(T, Bp, H)      # time-reversed order
    outputs = jnp.concatenate([out_f, out_b_rev[::-1]], axis=-1)
    outputs = jnp.transpose(outputs[:, :B, :], (1, 0, 2))       # (B, T, 2H)

    # Final states: fwd = last step of out_f; bwd = last step the backward cell
    # processed (= last row block of the reversed stream).
    h_f_fin = out_f[T - 1]                         # (Bp, H)
    h_b_fin = out_b_rev[T - 1]                     # (Bp, H)

    hidden_p = pl.pallas_call(
        fc_tanh_kernel,
        grid=(1,),
        in_specs=[
            pl.BlockSpec((Bp, H), lambda i: (0, 0)),
            pl.BlockSpec((Bp, H), lambda i: (0, 0)),
            pl.BlockSpec((H, D), lambda i: (0, 0)),
            pl.BlockSpec((H, D), lambda i: (0, 0)),
            pl.BlockSpec((1, D), lambda i: (0, 0)),
        ],
        out_specs=pl.BlockSpec((Bp, D), lambda i: (0, 0)),
        out_shape=jax.ShapeDtypeStruct((Bp, D), jnp.float32),
    )(h_f_fin, h_b_fin, w_fc_f, w_fc_b, b_fc)
    hidden = hidden_p[:B]
    return outputs, hidden


# --------------------------- parameters -------------------------------------
def init_params(key, E, H, D):
    ks = jax.random.split(key, 10)
    s = 1.0 / math.sqrt(H)           # PyTorch LSTM init: U(-1/sqrt(H), 1/sqrt(H))
    u = lambda k, shape, bound: jax.random.uniform(k, shape, jnp.float32,
                                                   -bound, bound)
    sf = 1.0 / math.sqrt(2 * H)      # Linear init bound ~ 1/sqrt(fan_in)
    return dict(
        wih_f=u(ks[0], (4 * H, E), s), whh_f=u(ks[1], (4 * H, H), s),
        bih_f=u(ks[2], (4 * H,), s),   bhh_f=u(ks[3], (4 * H,), s),
        wih_b=u(ks[4], (4 * H, E), s), whh_b=u(ks[5], (4 * H, H), s),
        bih_b=u(ks[6], (4 * H,), s),   bhh_b=u(ks[7], (4 * H,), s),
        wfc=u(ks[8], (D, 2 * H), sf),  bfc=u(ks[9], (D,), sf),
    )


# --------------------------- pure-JAX reference -----------------------------
def _lstm_dir_ref(x, wih, whh, b, reverse):
    B, T, E = x.shape
    H = whh.shape[1]

    def step(carry, xt):
        h, c = carry
        gates = xt @ wih.T + b + h @ whh.T
        i = jax.nn.sigmoid(gates[:, :H])
        f = jax.nn.sigmoid(gates[:, H:2 * H])
        g = jnp.tanh(gates[:, 2 * H:3 * H])
        o = jax.nn.sigmoid(gates[:, 3 * H:])
        c = f * c + i * g
        h = o * jnp.tanh(c)
        return (h, c), h

    xs = jnp.transpose(x, (1, 0, 2))
    if reverse:
        xs = xs[::-1]
    (h, _), ys = lax.scan(step, (jnp.zeros((B, H)), jnp.zeros((B, H))), xs)
    if reverse:
        ys = ys[::-1]
    return jnp.transpose(ys, (1, 0, 2)), h


def encoder_reference(x, params):
    out_f, h_f = _lstm_dir_ref(x, params["wih_f"], params["whh_f"],
                               params["bih_f"] + params["bhh_f"], False)
    out_b, h_b = _lstm_dir_ref(x, params["wih_b"], params["whh_b"],
                               params["bih_b"] + params["bhh_b"], True)
    outputs = jnp.concatenate([out_f, out_b], axis=-1)
    hidden = jnp.tanh(jnp.concatenate([h_f, h_b], axis=1) @ params["wfc"].T
                      + params["bfc"])
    return outputs, hidden


if __name__ == "__main__":
    key = jax.random.PRNGKey(0)
    B, T, E, H, D = 2, 8, 32, 32, 32   # batch, seq, embedding, enc_hidden, dec_hidden
    kx, kp = jax.random.split(key)
    x = jax.random.normal(kx, (B, T, E), jnp.float32)
    params = init_params(kp, E, H, D)

    outputs, hidden = jax.jit(encoder_forward)(x, params)
    jax.block_until_ready((outputs, hidden))

    ref_out, ref_hid = encoder_reference(x, params)
    assert outputs.shape == (B, T, 2 * H) and hidden.shape == (B, D)
    assert jnp.allclose(outputs, ref_out, atol=1e-3, rtol=1e-3)
    assert jnp.allclose(hidden, ref_hid, atol=1e-3, rtol=1e-3)

    print("KERNEL_OK")
</pallas_src>

<mosaic_0001>
module attributes {stable_mosaic.version = 11 : i64} {
  func.func @fc_tanh_kernel(%arg0: i32, %arg1: memref<8x32xf32, #tpu.memory_space<vmem>>, %arg2: memref<8x32xf32, #tpu.memory_space<vmem>>, %arg3: memref<32x32xf32, #tpu.memory_space<vmem>>, %arg4: memref<32x32xf32, #tpu.memory_space<vmem>>, %arg5: memref<1x32xf32, #tpu.memory_space<vmem>>, %arg6: memref<8x32xf32, #tpu.memory_space<vmem>>) attributes {dimension_semantics = [#tpu.dimension_semantics<arbitrary>], iteration_bounds = array<i64: 1>, scalar_prefetch = 0 : i64, scratch_operands = 0 : i64, tpu.core_type = #tpu.core_type<tc>, window_params = [{pipeline_mode = #tpu.pipeline_mode<synchronous>, transform_indices = @transform_0, window_bounds = array<i64: 8, 32>}, {pipeline_mode = #tpu.pipeline_mode<synchronous>, transform_indices = @transform_1, window_bounds = array<i64: 8, 32>}, {pipeline_mode = #tpu.pipeline_mode<synchronous>, transform_indices = @transform_2, window_bounds = array<i64: 32, 32>}, {pipeline_mode = #tpu.pipeline_mode<synchronous>, transform_indices = @transform_3, window_bounds = array<i64: 32, 32>}, {pipeline_mode = #tpu.pipeline_mode<synchronous>, transform_indices = @transform_4, window_bounds = array<i64: 1, 32>}, {pipeline_mode = #tpu.pipeline_mode<synchronous>, transform_indices = @transform_5, window_bounds = array<i64: 8, 32>}]} {
    %c0 = arith.constant 0 : index
    %c0_0 = arith.constant 0 : index
    %0 = vector.load %arg1[%c0, %c0_0] : memref<8x32xf32, #tpu.memory_space<vmem>>, vector<8x32xf32>
    %c0_1 = arith.constant 0 : index
    %c0_2 = arith.constant 0 : index
    %1 = vector.load %arg3[%c0_1, %c0_2] : memref<32x32xf32, #tpu.memory_space<vmem>>, vector<32x32xf32>
    %cst = arith.constant dense<0.000000e+00> : vector<8x32xf32>
    %2 = tpu.matmul %0, %1, %cst {dimension_numbers = #tpu.dot_dimension_numbers<[1], [0], [0], [1], [0, 0, 1, 1], [], []>} : vector<8x32xf32>, vector<32x32xf32>, vector<8x32xf32> -> vector<8x32xf32>
    %c0_3 = arith.constant 0 : index
    %c0_4 = arith.constant 0 : index
    %3 = vector.load %arg2[%c0_3, %c0_4] : memref<8x32xf32, #tpu.memory_space<vmem>>, vector<8x32xf32>
    %c0_5 = arith.constant 0 : index
    %c0_6 = arith.constant 0 : index
    %4 = vector.load %arg4[%c0_5, %c0_6] : memref<32x32xf32, #tpu.memory_space<vmem>>, vector<32x32xf32>
    %cst_7 = arith.constant dense<0.000000e+00> : vector<8x32xf32>
    %5 = tpu.matmul %3, %4, %cst_7 {dimension_numbers = #tpu.dot_dimension_numbers<[1], [0], [0], [1], [0, 0, 1, 1], [], []>} : vector<8x32xf32>, vector<32x32xf32>, vector<8x32xf32> -> vector<8x32xf32>
    %6 = arith.addf %2, %5 : vector<8x32xf32>
    %c0_8 = arith.constant 0 : index
    %c0_9 = arith.constant 0 : index
    %7 = vector.load %arg5[%c0_8, %c0_9] : memref<1x32xf32, #tpu.memory_space<vmem>>, vector<1x32xf32>
    %8 = vector.broadcast %7 : vector<1x32xf32> to vector<8x32xf32>
    %9 = arith.addf %6, %8 : vector<8x32xf32>
    %10 = math.tanh %9 : vector<8x32xf32>
    %c0_10 = arith.constant 0 : index
    %c0_11 = arith.constant 0 : index
    %11 = vector.load %arg6[%c0_10, %c0_11] : memref<8x32xf32, #tpu.memory_space<vmem>>, vector<8x32xf32>
    tpu.vector_store %arg6[%c0_10, %c0_11], %10 {strides = array<i32>} : memref<8x32xf32, #tpu.memory_space<vmem>>, vector<8x32xf32>,
    return
  }
  func.func @transform_0(%arg0: i32) -> (i32, i32) {
    %c0_i32 = arith.constant 0 : i32
    %c0_i32_0 = arith.constant 0 : i32
    %c0_i32_1 = arith.constant 0 : i32
    return %c0_i32, %c0_i32_0 : i32, i32
  }
  func.func @transform_1(%arg0: i32) -> (i32, i32) {
    %c0_i32 = arith.constant 0 : i32
    %c0_i32_0 = arith.constant 0 : i32
    %c0_i32_1 = arith.constant 0 : i32
    return %c0_i32, %c0_i32_0 : i32, i32
  }
  func.func @transform_2(%arg0: i32) -> (i32, i32) {
    %c0_i32 = arith.constant 0 : i32
    %c0_i32_0 = arith.constant 0 : i32
    %c0_i32_1 = arith.constant 0 : i32
    return %c0_i32, %c0_i32_0 : i32, i32
  }
  func.func @transform_3(%arg0: i32) -> (i32, i32) {
    %c0_i32 = arith.constant 0 : i32
    %c0_i32_0 = arith.constant 0 : i32
    %c0_i32_1 = arith.constant 0 : i32
    return %c0_i32, %c0_i32_0 : i32, i32
  }
  func.func @transform_4(%arg0: i32) -> (i32, i32) {
    %c0_i32 = arith.constant 0 : i32
    %c0_i32_0 = arith.constant 0 : i32
    %c0_i32_1 = arith.constant 0 : i32
    return %c0_i32, %c0_i32_0 : i32, i32
  }
  func.func @transform_5(%arg0: i32) -> (i32, i32) {
    %c0_i32 = arith.constant 0 : i32
    %c0_i32_0 = arith.constant 0 : i32
    %c0_i32_1 = arith.constant 0 : i32
    return %c0_i32, %c0_i32_0 : i32, i32
  }
}

module attributes {stable_mosaic.version = 11 : i64} {
  func.func @lstm_dir_kernel(%arg0: i32, %arg1: i32, %arg2: memref<1x64x32xf32, #tpu.memory_space<vmem>>, %arg3: memref<1x32x128xf32, #tpu.memory_space<vmem>>, %arg4: memref<1x1x128xf32, #tpu.memory_space<vmem>>, %arg5: memref<1x32x128xf32, #tpu.memory_space<vmem>>, %arg6: memref<1x64x32xf32, #tpu.memory_space<vmem>>, %arg7: memref<64x128xf32, #tpu.memory_space<vmem>>, %arg8: memref<8x32xf32, #tpu.memory_space<vmem>>, %arg9: memref<8x32xf32, #tpu.memory_space<vmem>>) attributes {dimension_semantics = [#tpu.dimension_semantics<parallel>, #tpu.dimension_semantics<arbitrary>], iteration_bounds = array<i64: 2, 1>, scalar_prefetch = 0 : i64, scratch_operands = 3 : i64, tpu.core_type = #tpu.core_type<tc>, window_params = [{transform_indices = @transform_0, window_bounds = array<i64: 1, 64, 32>}, {transform_indices = @transform_1, window_bounds = array<i64: 1, 32, 128>}, {transform_indices = @transform_2, window_bounds = array<i64: 1, 1, 128>}, {transform_indices = @transform_3, window_bounds = array<i64: 1, 32, 128>}, {transform_indices = @transform_4, window_bounds = array<i64: 1, 64, 32>}]} {
    %c0 = arith.constant 0 : index
    %c0_0 = arith.constant 0 : index
    %c0_1 = arith.constant 0 : index
    %0 = vector.load %arg2[%c0, %c0_0, %c0_1] : memref<1x64x32xf32, #tpu.memory_space<vmem>>, vector<1x64x32xf32>
    %1 = vector.shape_cast %0 : vector<1x64x32xf32> to vector<64x32xf32>
    %c0_2 = arith.constant 0 : index
    %c0_3 = arith.constant 0 : index
    %c0_4 = arith.constant 0 : index
    %2 = vector.load %arg3[%c0_2, %c0_3, %c0_4] : memref<1x32x128xf32, #tpu.memory_space<vmem>>, vector<1x32x128xf32>
    %3 = vector.shape_cast %2 : vector<1x32x128xf32> to vector<32x128xf32>
    %cst = arith.constant dense<0.000000e+00> : vector<64x128xf32>
    %4 = tpu.matmul %1, %3, %cst {dimension_numbers = #tpu.dot_dimension_numbers<[1], [0], [0], [1], [0, 0, 1, 1], [], []>} : vector<64x32xf32>, vector<32x128xf32>, vector<64x128xf32> -> vector<64x128xf32>
    %c0_5 = arith.constant 0 : index
    %c0_6 = arith.constant 0 : index
    %c0_7 = arith.constant 0 : index
    %5 = vector.load %arg4[%c0_5, %c0_6, %c0_7] : memref<1x1x128xf32, #tpu.memory_space<vmem>>, vector<1x1x128xf32>
    %6 = vector.shape_cast %5 : vector<1x1x128xf32> to vector<1x128xf32>
    %7 = vector.broadcast %6 : vector<1x128xf32> to vector<64x128xf32>
    %8 = arith.addf %4, %7 : vector<64x128xf32>
    %c0_8 = arith.constant 0 : index
    %c0_9 = arith.constant 0 : index
    %9 = vector.load %arg7[%c0_8, %c0_9] : memref<64x128xf32, #tpu.memory_space<vmem>>, vector<64x128xf32>
    tpu.vector_store %arg7[%c0_8, %c0_9], %8 {strides = array<i32>} : memref<64x128xf32, #tpu.memory_space<vmem>>, vector<64x128xf32>,
    %c0_i32 = arith.constant 0 : i32
    %10 = arith.cmpi eq, %arg1, %c0_i32 : i32
    %11 = arith.extui %10 : i1 to i32
    %c0_i32_10 = arith.constant 0 : i32
    %12 = arith.cmpi ne, %11, %c0_i32_10 : i32
    scf.if %12 {
      %cst_87 = arith.constant 0.000000e+00 : f32
      %243 = vector.broadcast %cst_87 : f32 to vector<8x32xf32>
      %c0_88 = arith.constant 0 : index
      %c0_89 = arith.constant 0 : index
      %244 = vector.load %arg8[%c0_88, %c0_89] : memref<8x32xf32, #tpu.memory_space<vmem>>, vector<8x32xf32>
      tpu.vector_store %arg8[%c0_88, %c0_89], %243 {strides = array<i32>} : memref<8x32xf32, #tpu.memory_space<vmem>>, vector<8x32xf32>,
      %cst_90 = arith.constant 0.000000e+00 : f32
      %245 = vector.broadcast %cst_90 : f32 to vector<8x32xf32>
      %c0_91 = arith.constant 0 : index
      %c0_92 = arith.constant 0 : index
      %246 = vector.load %arg9[%c0_91, %c0_92] : memref<8x32xf32, #tpu.memory_space<vmem>>, vector<8x32xf32>
      tpu.vector_store %arg9[%c0_91, %c0_92], %245 {strides = array<i32>} : memref<8x32xf32, #tpu.memory_space<vmem>>, vector<8x32xf32>,
    } else {
    }
    %c0_11 = arith.constant 0 : index
    %c0_12 = arith.constant 0 : index
    %c0_13 = arith.constant 0 : index
    %13 = vector.load %arg5[%c0_11, %c0_12, %c0_13] : memref<1x32x128xf32, #tpu.memory_space<vmem>>, vector<1x32x128xf32>
    %14 = vector.shape_cast %13 : vector<1x32x128xf32> to vector<32x128xf32>
    %c0_14 = arith.constant 0 : index
    %c0_15 = arith.constant 0 : index
    %15 = vector.load %arg8[%c0_14, %c0_15] : memref<8x32xf32, #tpu.memory_space<vmem>>, vector<8x32xf32>
    %c0_16 = arith.constant 0 : index
    %c0_17 = arith.constant 0 : index
    %16 = vector.load %arg9[%c0_16, %c0_17] : memref<8x32xf32, #tpu.memory_space<vmem>>, vector<8x32xf32>
    %c0_i32_18 = arith.constant 0 : i32
    %c8_i32 = arith.constant 8 : i32
    %17 = arith.muli %c0_i32_18, %c8_i32 : i32
    %18 = tpu.assume_multiple %17, 8 : i32
    %cst_19 = arith.constant dense<0.000000e+00> : vector<8x128xf32>
    %19 = tpu.matmul %15, %14, %cst_19 {dimension_numbers = #tpu.dot_dimension_numbers<[1], [0], [0], [1], [0, 0, 1, 1], [], []>} : vector<8x32xf32>, vector<32x128xf32>, vector<8x128xf32> -> vector<8x128xf32>
    %20 = arith.index_cast %18 : i32 to index
    %c0_20 = arith.constant 0 : index
    %21 = vector.load %arg7[%20, %c0_20] : memref<64x128xf32, #tpu.memory_space<vmem>>, vector<8x128xf32>
    %22 = arith.addf %19, %21 : vector<8x128xf32>
    %23 = vector.extract_strided_slice %22 {offsets = [0, 0], sizes = [8, 96], strides = [1, 1]} : vector<8x128xf32> to vector<8x96xf32>
    %cst_21 = arith.constant 5.000000e-01 : f32
    %24 = vector.broadcast %cst_21 : f32 to vector<8x96xf32>
    %25 = arith.mulf %24, %23 : vector<8x96xf32>
    %26 = math.tanh %25 : vector<8x96xf32>
    %cst_22 = arith.constant 5.000000e-01 : f32
    %27 = vector.broadcast %cst_22 : f32 to vector<8x96xf32>
    %28 = arith.mulf %27, %26 : vector<8x96xf32>
    %cst_23 = arith.constant 5.000000e-01 : f32
    %29 = vector.broadcast %cst_23 : f32 to vector<8x96xf32>
    %30 = arith.addf %28, %29 : vector<8x96xf32>
    %31 = vector.extract_strided_slice %22 {offsets = [0, 96], sizes = [8, 32], strides = [1, 1]} : vector<8x128xf32> to vector<8x32xf32>
    %32 = math.tanh %31 : vector<8x32xf32>
    %33 = vector.extract_strided_slice %30 {offsets = [0, 32], sizes = [8, 32], strides = [1, 1]} : vector<8x96xf32> to vector<8x32xf32>
    %34 = arith.mulf %33, %16 : vector<8x32xf32>
    %35 = vector.extract_strided_slice %30 {offsets = [0, 0], sizes = [8, 32], strides = [1, 1]} : vector<8x96xf32> to vector<8x32xf32>
    %36 = arith.mulf %35, %32 : vector<8x32xf32>
    %37 = arith.addf %34, %36 : vector<8x32xf32>
    %38 = vector.extract_strided_slice %30 {offsets = [0, 64], sizes = [8, 32], strides = [1, 1]} : vector<8x96xf32> to vector<8x32xf32>
    %39 = math.tanh %37 : vector<8x32xf32>
    %40 = arith.mulf %38, %39 : vector<8x32xf32>
    %c0_24 = arith.constant 0 : index
    %41 = arith.index_cast %18 : i32 to index
    %c0_25 = arith.constant 0 : index
    %42 = vector.load %arg6[%c0_24, %41, %c0_25] : memref<1x64x32xf32, #tpu.memory_space<vmem>>, vector<1x8x32xf32>
    %43 = vector.shape_cast %42 : vector<1x8x32xf32> to vector<8x32xf32>
    %44 = vector.shape_cast %40 : vector<8x32xf32> to vector<1x8x32xf32>
    tpu.vector_store %arg6[%c0_24, %41, %c0_25], %44 {strides = array<i32>} : memref<1x64x32xf32, #tpu.memory_space<vmem>>, vector<1x8x32xf32>,
    %c1_i32 = arith.constant 1 : i32
    %c8_i32_26 = arith.constant 8 : i32
    %45 = arith.muli %c1_i32, %c8_i32_26 : i32
    %46 = tpu.assume_multiple %45, 8 : i32
    %cst_27 = arith.constant dense<0.000000e+00> : vector<8x128xf32>
    %47 = tpu.matmul %40, %14, %cst_27 {dimension_numbers = #tpu.dot_dimension_numbers<[1], [0], [0], [1], [0, 0, 1, 1], [], []>} : vector<8x32xf32>, vector<32x128xf32>, vector<8x128xf32> -> vector<8x128xf32>
    %48 = arith.index_cast %46 : i32 to index
    %c0_28 = arith.constant 0 : index
    %49 = vector.load %arg7[%48, %c0_28] : memref<64x128xf32, #tpu.memory_space<vmem>>, vector<8x128xf32>
    %50 = arith.addf %47, %49 : vector<8x128xf32>
    %51 = vector.extract_strided_slice %50 {offsets = [0, 0], sizes = [8, 96], strides = [1, 1]} : vector<8x128xf32> to vector<8x96xf32>
    %cst_29 = arith.constant 5.000000e-01 : f32
    %52 = vector.broadcast %cst_29 : f32 to vector<8x96xf32>
    %53 = arith.mulf %52, %51 : vector<8x96xf32>
    %54 = math.tanh %53 : vector<8x96xf32>
    %cst_30 = arith.constant 5.000000e-01 : f32
    %55 = vector.broadcast %cst_30 : f32 to vector<8x96xf32>
    %56 = arith.mulf %55, %54 : vector<8x96xf32>
    %cst_31 = arith.constant 5.000000e-01 : f32
    %57 = vector.broadcast %cst_31 : f32 to vector<8x96xf32>
    %58 = arith.addf %56, %57 : vector<8x96xf32>
    %59 = vector.extract_strided_slice %50 {offsets = [0, 96], sizes = [8, 32], strides = [1, 1]} : vector<8x128xf32> to vector<8x32xf32>
    %60 = math.tanh %59 : vector<8x32xf32>
    %61 = vector.extract_strided_slice %58 {offsets = [0, 32], sizes = [8, 32], strides = [1, 1]} : vector<8x96xf32> to vector<8x32xf32>
    %62 = arith.mulf %61, %37 : vector<8x32xf32>
    %63 = vector.extract_strided_slice %58 {offsets = [0, 0], sizes = [8, 32], strides = [1, 1]} : vector<8x96xf32> to vector<8x32xf32>
    %64 = arith.mulf %63, %60 : vector<8x32xf32>
    %65 = arith.addf %62, %64 : vector<8x32xf32>
    %66 = vector.extract_strided_slice %58 {offsets = [0, 64], sizes = [8, 32], strides = [1, 1]} : vector<8x96xf32> to vector<8x32xf32>
    %67 = math.tanh %65 : vector<8x32xf32>
    %68 = arith.mulf %66, %67 : vector<8x32xf32>
    %c0_32 = arith.constant 0 : index
    %69 = arith.index_cast %46 : i32 to index
    %c0_33 = arith.constant 0 : index
    %70 = vector.load %arg6[%c0_32, %69, %c0_33] : memref<1x64x32xf32, #tpu.memory_space<vmem>>, vector<1x8x32xf32>
    %71 = vector.shape_cast %70 : vector<1x8x32xf32> to vector<8x32xf32>
    %72 = vector.shape_cast %68 : vector<8x32xf32> to vector<1x8x32xf32>
    tpu.vector_store %arg6[%c0_32, %69, %c0_33], %72 {strides = array<i32>} : memref<1x64x32xf32, #tpu.memory_space<vmem>>, vector<1x8x32xf32>,
    %c2_i32 = arith.constant 2 : i32
    %c8_i32_34 = arith.constant 8 : i32
    %73 = arith.muli %c2_i32, %c8_i32_34 : i32
    %74 = tpu.assume_multiple %73, 8 : i32
    %cst_35 = arith.constant dense<0.000000e+00> : vector<8x128xf32>
    %75 = tpu.matmul %68, %14, %cst_35 {dimension_numbers = #tpu.dot_dimension_numbers<[1], [0], [0], [1], [0, 0, 1, 1], [], []>} : vector<8x32xf32>, vector<32x128xf32>, vector<8x128xf32> -> vector<8x128xf32>
    %76 = arith.index_cast %74 : i32 to index
    %c0_36 = arith.constant 0 : index
    %77 = vector.load %arg7[%76, %c0_36] : memref<64x128xf32, #tpu.memory_space<vmem>>, vector<8x128xf32>
    %78 = arith.addf %75, %77 : vector<8x128xf32>
    %79 = vector.extract_strided_slice %78 {offsets = [0, 0], sizes = [8, 96], strides = [1, 1]} : vector<8x128xf32> to vector<8x96xf32>
    %cst_37 = arith.constant 5.000000e-01 : f32
    %80 = vector.broadcast %cst_37 : f32 to vector<8x96xf32>
    %81 = arith.mulf %80, %79 : vector<8x96xf32>
    %82 = math.tanh %81 : vector<8x96xf32>
    %cst_38 = arith.constant 5.000000e-01 : f32
    %83 = vector.broadcast %cst_38 : f32 to vector<8x96xf32>
    %84 = arith.mulf %83, %82 : vector<8x96xf32>
    %cst_39 = arith.constant 5.000000e-01 : f32
    %85 = vector.broadcast %cst_39 : f32 to vector<8x96xf32>
    %86 = arith.addf %84, %85 : vector<8x96xf32>
    %87 = vector.extract_strided_slice %78 {offsets = [0, 96], sizes = [8, 32], strides = [1, 1]} : vector<8x128xf32> to vector<8x32xf32>
    %88 = math.tanh %87 : vector<8x32xf32>
    %89 = vector.extract_strided_slice %86 {offsets = [0, 32], sizes = [8, 32], strides = [1, 1]} : vector<8x96xf32> to vector<8x32xf32>
    %90 = arith.mulf %89, %65 : vector<8x32xf32>
    %91 = vector.extract_strided_slice %86 {offsets = [0, 0], sizes = [8, 32], strides = [1, 1]} : vector<8x96xf32> to vector<8x32xf32>
    %92 = arith.mulf %91, %88 : vector<8x32xf32>
    %93 = arith.addf %90, %92 : vector<8x32xf32>
    %94 = vector.extract_strided_slice %86 {offsets = [0, 64], sizes = [8, 32], strides = [1, 1]} : vector<8x96xf32> to vector<8x32xf32>
    %95 = math.tanh %93 : vector<8x32xf32>
    %96 = arith.mulf %94, %95 : vector<8x32xf32>
    %c0_40 = arith.constant 0 : index
    %97 = arith.index_cast %74 : i32 to index
    %c0_41 = arith.constant 0 : index
    %98 = vector.load %arg6[%c0_40, %97, %c0_41] : memref<1x64x32xf32, #tpu.memory_space<vmem>>, vector<1x8x32xf32>
    %99 = vector.shape_cast %98 : vector<1x8x32xf32> to vector<8x32xf32>
    %100 = vector.shape_cast %96 : vector<8x32xf32> to vector<1x8x32xf32>
    tpu.vector_store %arg6[%c0_40, %97, %c0_41], %100 {strides = array<i32>} : memref<1x64x32xf32, #tpu.memory_space<vmem>>, vector<1x8x32xf32>,
    %c3_i32 = arith.constant 3 : i32
    %c8_i32_42 = arith.constant 8 : i32
    %101 = arith.muli %c3_i32, %c8_i32_42 : i32
    %102 = tpu.assume_multiple %101, 8 : i32
    %cst_43 = arith.constant dense<0.000000e+00> : vector<8x128xf32>
    %103 = tpu.matmul %96, %14, %cst_43 {dimension_numbers = #tpu.dot_dimension_numbers<[1], [0], [0], [1], [0, 0, 1, 1], [], []>} : vector<8x32xf32>, vector<32x128xf32>, vector<8x128xf32> -> vector<8x128xf32>
    %104 = arith.index_cast %102 : i32 to index
    %c0_44 = arith.constant 0 : index
    %105 = vector.load %arg7[%104, %c0_44] : memref<64x128xf32, #tpu.memory_space<vmem>>, vector<8x128xf32>
    %106 = arith.addf %103, %105 : vector<8x128xf32>
    %107 = vector.extract_strided_slice %106 {offsets = [0, 0], sizes = [8, 96], strides = [1, 1]} : vector<8x128xf32> to vector<8x96xf32>
    %cst_45 = arith.constant 5.000000e-01 : f32
    %108 = vector.broadcast %cst_45 : f32 to vector<8x96xf32>
    %109 = arith.mulf %108, %107 : vector<8x96xf32>
    %110 = math.tanh %109 : vector<8x96xf32>
    %cst_46 = arith.constant 5.000000e-01 : f32
    %111 = vector.broadcast %cst_46 : f32 to vector<8x96xf32>
    %112 = arith.mulf %111, %110 : vector<8x96xf32>
    %cst_47 = arith.constant 5.000000e-01 : f32
    %113 = vector.broadcast %cst_47 : f32 to vector<8x96xf32>
    %114 = arith.addf %112, %113 : vector<8x96xf32>
    %115 = vector.extract_strided_slice %106 {offsets = [0, 96], sizes = [8, 32], strides = [1, 1]} : vector<8x128xf32> to vector<8x32xf32>
    %116 = math.tanh %115 : vector<8x32xf32>
    %117 = vector.extract_strided_slice %114 {offsets = [0, 32], sizes = [8, 32], strides = [1, 1]} : vector<8x96xf32> to vector<8x32xf32>
    %118 = arith.mulf %117, %93 : vector<8x32xf32>
    %119 = vector.extract_strided_slice %114 {offsets = [0, 0], sizes = [8, 32], strides = [1, 1]} : vector<8x96xf32> to vector<8x32xf32>
    %120 = arith.mulf %119, %116 : vector<8x32xf32>
    %121 = arith.addf %118, %120 : vector<8x32xf32>
    %122 = vector.extract_strided_slice %114 {offsets = [0, 64], sizes = [8, 32], strides = [1, 1]} : vector<8x96xf32> to vector<8x32xf32>
    %123 = math.tanh %121 : vector<8x32xf32>
    %124 = arith.mulf %122, %123 : vector<8x32xf32>
    %c0_48 = arith.constant 0 : index
    %125 = arith.index_cast %102 : i32 to index
    %c0_49 = arith.constant 0 : index
    %126 = vector.load %arg6[%c0_48, %125, %c0_49] : memref<1x64x32xf32, #tpu.memory_space<vmem>>, vector<1x8x32xf32>
    %127 = vector.shape_cast %126 : vector<1x8x32xf32> to vector<8x32xf32>
    %128 = vector.shape_cast %124 : vector<8x32xf32> to vector<1x8x32xf32>
    tpu.vector_store %arg6[%c0_48, %125, %c0_49], %128 {strides = array<i32>} : memref<1x64x32xf32, #tpu.memory_space<vmem>>, vector<1x8x32xf32>,
    %c4_i32 = arith.constant 4 : i32
    %c8_i32_50 = arith.constant 8 : i32
    %129 = arith.muli %c4_i32, %c8_i32_50 : i32
    %130 = tpu.assume_multiple %129, 8 : i32
    %cst_51 = arith.constant dense<0.000000e+00> : vector<8x128xf32>
    %131 = tpu.matmul %124, %14, %cst_51 {dimension_numbers = #tpu.dot_dimension_numbers<[1], [0], [0], [1], [0, 0, 1, 1], [], []>} : vector<8x32xf32>, vector<32x128xf32>, vector<8x128xf32> -> vector<8x128xf32>
    %132 = arith.index_cast %130 : i32 to index
    %c0_52 = arith.constant 0 : index
    %133 = vector.load %arg7[%132, %c0_52] : memref<64x128xf32, #tpu.memory_space<vmem>>, vector<8x128xf32>
    %134 = arith.addf %131, %133 : vector<8x128xf32>
    %135 = vector.extract_strided_slice %134 {offsets = [0, 0], sizes = [8, 96], strides = [1, 1]} : vector<8x128xf32> to vector<8x96xf32>
    %cst_53 = arith.constant 5.000000e-01 : f32
    %136 = vector.broadcast %cst_53 : f32 to vector<8x96xf32>
    %137 = arith.mulf %136, %135 : vector<8x96xf32>
    %138 = math.tanh %137 : vector<8x96xf32>
    %cst_54 = arith.constant 5.000000e-01 : f32
    %139 = vector.broadcast %cst_54 : f32 to vector<8x96xf32>
    %140 = arith.mulf %139, %138 : vector<8x96xf32>
    %cst_55 = arith.constant 5.000000e-01 : f32
    %141 = vector.broadcast %cst_55 : f32 to vector<8x96xf32>
    %142 = arith.addf %140, %141 : vector<8x96xf32>
    %143 = vector.extract_strided_slice %134 {offsets = [0, 96], sizes = [8, 32], strides = [1, 1]} : vector<8x128xf32> to vector<8x32xf32>
    %144 = math.tanh %143 : vector<8x32xf32>
    %145 = vector.extract_strided_slice %142 {offsets = [0, 32], sizes = [8, 32], strides = [1, 1]} : vector<8x96xf32> to vector<8x32xf32>
    %146 = arith.mulf %145, %121 : vector<8x32xf32>
    %147 = vector.extract_strided_slice %142 {offsets = [0, 0], sizes = [8, 32], strides = [1, 1]} : vector<8x96xf32> to vector<8x32xf32>
    %148 = arith.mulf %147, %144 : vector<8x32xf32>
    %149 = arith.addf %146, %148 : vector<8x32xf32>
    %150 = vector.extract_strided_slice %142 {offsets = [0, 64], sizes = [8, 32], strides = [1, 1]} : vector<8x96xf32> to vector<8x32xf32>
    %151 = math.tanh %149 : vector<8x32xf32>
    %152 = arith.mulf %150, %151 : vector<8x32xf32>
    %c0_56 = arith.constant 0 : index
    %153 = arith.index_cast %130 : i32 to index
    %c0_57 = arith.constant 0 : index
    %154 = vector.load %arg6[%c0_56, %153, %c0_57] : memref<1x64x32xf32, #tpu.memory_space<vmem>>, vector<1x8x32xf32>
    %155 = vector.shape_cast %154 : vector<1x8x32xf32> to vector<8x32xf32>
    %156 = vector.shape_cast %152 : vector<8x32xf32> to vector<1x8x32xf32>
    tpu.vector_store %arg6[%c0_56, %153, %c0_57], %156 {strides = array<i32>} : memref<1x64x32xf32, #tpu.memory_space<vmem>>, vector<1x8x32xf32>,
    %c5_i32 = arith.constant 5 : i32
    %c8_i32_58 = arith.constant 8 : i32
    %157 = arith.muli %c5_i32, %c8_i32_58 : i32
    %158 = tpu.assume_multiple %157, 8 : i32
    %cst_59 = arith.constant dense<0.000000e+00> : vector<8x128xf32>
    %159 = tpu.matmul %152, %14, %cst_59 {dimension_numbers = #tpu.dot_dimension_numbers<[1], [0], [0], [1], [0, 0, 1, 1], [], []>} : vector<8x32xf32>, vector<32x128xf32>, vector<8x128xf32> -> vector<8x128xf32>
    %160 = arith.index_cast %158 : i32 to index
    %c0_60 = arith.constant 0 : index
    %161 = vector.load %arg7[%160, %c0_60] : memref<64x128xf32, #tpu.memory_space<vmem>>, vector<8x128xf32>
    %162 = arith.addf %159, %161 : vector<8x128xf32>
    %163 = vector.extract_strided_slice %162 {offsets = [0, 0], sizes = [8, 96], strides = [1, 1]} : vector<8x128xf32> to vector<8x96xf32>
    %cst_61 = arith.constant 5.000000e-01 : f32
    %164 = vector.broadcast %cst_61 : f32 to vector<8x96xf32>
    %165 = arith.mulf %164, %163 : vector<8x96xf32>
    %166 = math.tanh %165 : vector<8x96xf32>
    %cst_62 = arith.constant 5.000000e-01 : f32
    %167 = vector.broadcast %cst_62 : f32 to vector<8x96xf32>
    %168 = arith.mulf %167, %166 : vector<8x96xf32>
    %cst_63 = arith.constant 5.000000e-01 : f32
    %169 = vector.broadcast %cst_63 : f32 to vector<8x96xf32>
    %170 = arith.addf %168, %169 : vector<8x96xf32>
    %171 = vector.extract_strided_slice %162 {offsets = [0, 96], sizes = [8, 32], strides = [1, 1]} : vector<8x128xf32> to vector<8x32xf32>
    %172 = math.tanh %171 : vector<8x32xf32>
    %173 = vector.extract_strided_slice %170 {offsets = [0, 32], sizes = [8, 32], strides = [1, 1]} : vector<8x96xf32> to vector<8x32xf32>
    %174 = arith.mulf %173, %149 : vector<8x32xf32>
    %175 = vector.extract_strided_slice %170 {offsets = [0, 0], sizes = [8, 32], strides = [1, 1]} : vector<8x96xf32> to vector<8x32xf32>
    %176 = arith.mulf %175, %172 : vector<8x32xf32>
    %177 = arith.addf %174, %176 : vector<8x32xf32>
    %178 = vector.extract_strided_slice %170 {offsets = [0, 64], sizes = [8, 32], strides = [1, 1]} : vector<8x96xf32> to vector<8x32xf32>
    %179 = math.tanh %177 : vector<8x32xf32>
    %180 = arith.mulf %178, %179 : vector<8x32xf32>
    %c0_64 = arith.constant 0 : index
    %181 = arith.index_cast %158 : i32 to index
    %c0_65 = arith.constant 0 : index
    %182 = vector.load %arg6[%c0_64, %181, %c0_65] : memref<1x64x32xf32, #tpu.memory_space<vmem>>, vector<1x8x32xf32>
    %183 = vector.shape_cast %182 : vector<1x8x32xf32> to vector<8x32xf32>
    %184 = vector.shape_cast %180 : vector<8x32xf32> to vector<1x8x32xf32>
    tpu.vector_store %arg6[%c0_64, %181, %c0_65], %184 {strides = array<i32>} : memref<1x64x32xf32, #tpu.memory_space<vmem>>, vector<1x8x32xf32>,
    %c6_i32 = arith.constant 6 : i32
    %c8_i32_66 = arith.constant 8 : i32
    %185 = arith.muli %c6_i32, %c8_i32_66 : i32
    %186 = tpu.assume_multiple %185, 8 : i32
    %cst_67 = arith.constant dense<0.000000e+00> : vector<8x128xf32>
    %187 = tpu.matmul %180, %14, %cst_67 {dimension_numbers = #tpu.dot_dimension_numbers<[1], [0], [0], [1], [0, 0, 1, 1], [], []>} : vector<8x32xf32>, vector<32x128xf32>, vector<8x128xf32> -> vector<8x128xf32>
    %188 = arith.index_cast %186 : i32 to index
    %c0_68 = arith.constant 0 : index
    %189 = vector.load %arg7[%188, %c0_68] : memref<64x128xf32, #tpu.memory_space<vmem>>, vector<8x128xf32>
    %190 = arith.addf %187, %189 : vector<8x128xf32>
    %191 = vector.extract_strided_slice %190 {offsets = [0, 0], sizes = [8, 96], strides = [1, 1]} : vector<8x128xf32> to vector<8x96xf32>
    %cst_69 = arith.constant 5.000000e-01 : f32
    %192 = vector.broadcast %cst_69 : f32 to vector<8x96xf32>
    %193 = arith.mulf %192, %191 : vector<8x96xf32>
    %194 = math.tanh %193 : vector<8x96xf32>
    %cst_70 = arith.constant 5.000000e-01 : f32
    %195 = vector.broadcast %cst_70 : f32 to vector<8x96xf32>
    %196 = arith.mulf %195, %194 : vector<8x96xf32>
    %cst_71 = arith.constant 5.000000e-01 : f32
    %197 = vector.broadcast %cst_71 : f32 to vector<8x96xf32>
    %198 = arith.addf %196, %197 : vector<8x96xf32>
    %199 = vector.extract_strided_slice %190 {offsets = [0, 96], sizes = [8, 32], strides = [1, 1]} : vector<8x128xf32> to vector<8x32xf32>
    %200 = math.tanh %199 : vector<8x32xf32>
    %201 = vector.extract_strided_slice %198 {offsets = [0, 32], sizes = [8, 32], strides = [1, 1]} : vector<8x96xf32> to vector<8x32xf32>
    %202 = arith.mulf %201, %177 : vector<8x32xf32>
    %203 = vector.extract_strided_slice %198 {offsets = [0, 0], sizes = [8, 32], strides = [1, 1]} : vector<8x96xf32> to vector<8x32xf32>
    %204 = arith.mulf %203, %200 : vector<8x32xf32>
    %205 = arith.addf %202, %204 : vector<8x32xf32>
    %206 = vector.extract_strided_slice %198 {offsets = [0, 64], sizes = [8, 32], strides = [1, 1]} : vector<8x96xf32> to vector<8x32xf32>
    %207 = math.tanh %205 : vector<8x32xf32>
    %208 = arith.mulf %206, %207 : vector<8x32xf32>
    %c0_72 = arith.constant 0 : index
    %209 = arith.index_cast %186 : i32 to index
    %c0_73 = arith.constant 0 : index
    %210 = vector.load %arg6[%c0_72, %209, %c0_73] : memref<1x64x32xf32, #tpu.memory_space<vmem>>, vector<1x8x32xf32>
    %211 = vector.shape_cast %210 : vector<1x8x32xf32> to vector<8x32xf32>
    %212 = vector.shape_cast %208 : vector<8x32xf32> to vector<1x8x32xf32>
    tpu.vector_store %arg6[%c0_72, %209, %c0_73], %212 {strides = array<i32>} : memref<1x64x32xf32, #tpu.memory_space<vmem>>, vector<1x8x32xf32>,
    %c7_i32 = arith.constant 7 : i32
    %c8_i32_74 = arith.constant 8 : i32
    %213 = arith.muli %c7_i32, %c8_i32_74 : i32
    %214 = tpu.assume_multiple %213, 8 : i32
    %cst_75 = arith.constant dense<0.000000e+00> : vector<8x128xf32>
    %215 = tpu.matmul %208, %14, %cst_75 {dimension_numbers = #tpu.dot_dimension_numbers<[1], [0], [0], [1], [0, 0, 1, 1], [], []>} : vector<8x32xf32>, vector<32x128xf32>, vector<8x128xf32> -> vector<8x128xf32>
    %216 = arith.index_cast %214 : i32 to index
    %c0_76 = arith.constant 0 : index
    %217 = vector.load %arg7[%216, %c0_76] : memref<64x128xf32, #tpu.memory_space<vmem>>, vector<8x128xf32>
    %218 = arith.addf %215, %217 : vector<8x128xf32>
    %219 = vector.extract_strided_slice %218 {offsets = [0, 0], sizes = [8, 96], strides = [1, 1]} : vector<8x128xf32> to vector<8x96xf32>
    %cst_77 = arith.constant 5.000000e-01 : f32
    %220 = vector.broadcast %cst_77 : f32 to vector<8x96xf32>
    %221 = arith.mulf %220, %219 : vector<8x96xf32>
    %222 = math.tanh %221 : vector<8x96xf32>
    %cst_78 = arith.constant 5.000000e-01 : f32
    %223 = vector.broadcast %cst_78 : f32 to vector<8x96xf32>
    %224 = arith.mulf %223, %222 : vector<8x96xf32>
    %cst_79 = arith.constant 5.000000e-01 : f32
    %225 = vector.broadcast %cst_79 : f32 to vector<8x96xf32>
    %226 = arith.addf %224, %225 : vector<8x96xf32>
    %227 = vector.extract_strided_slice %218 {offsets = [0, 96], sizes = [8, 32], strides = [1, 1]} : vector<8x128xf32> to vector<8x32xf32>
    %228 = math.tanh %227 : vector<8x32xf32>
    %229 = vector.extract_strided_slice %226 {offsets = [0, 32], sizes = [8, 32], strides = [1, 1]} : vector<8x96xf32> to vector<8x32xf32>
    %230 = arith.mulf %229, %205 : vector<8x32xf32>
    %231 = vector.extract_strided_slice %226 {offsets = [0, 0], sizes = [8, 32], strides = [1, 1]} : vector<8x96xf32> to vector<8x32xf32>
    %232 = arith.mulf %231, %228 : vector<8x32xf32>
    %233 = arith.addf %230, %232 : vector<8x32xf32>
    %234 = vector.extract_strided_slice %226 {offsets = [0, 64], sizes = [8, 32], strides = [1, 1]} : vector<8x96xf32> to vector<8x32xf32>
    %235 = math.tanh %233 : vector<8x32xf32>
    %236 = arith.mulf %234, %235 : vector<8x32xf32>
    %c0_80 = arith.constant 0 : index
    %237 = arith.index_cast %214 : i32 to index
    %c0_81 = arith.constant 0 : index
    %238 = vector.load %arg6[%c0_80, %237, %c0_81] : memref<1x64x32xf32, #tpu.memory_space<vmem>>, vector<1x8x32xf32>
    %239 = vector.shape_cast %238 : vector<1x8x32xf32> to vector<8x32xf32>
    %240 = vector.shape_cast %236 : vector<8x32xf32> to vector<1x8x32xf32>
    tpu.vector_store %arg6[%c0_80, %237, %c0_81], %240 {strides = array<i32>} : memref<1x64x32xf32, #tpu.memory_space<vmem>>, vector<1x8x32xf32>,
    %c8_i32_82 = arith.constant 8 : i32
    %c0_83 = arith.constant 0 : index
    %c0_84 = arith.constant 0 : index
    %241 = vector.load %arg8[%c0_83, %c0_84] : memref<8x32xf32, #tpu.memory_space<vmem>>, vector<8x32xf32>
    tpu.vector_store %arg8[%c0_83, %c0_84], %236 {strides = array<i32>} : memref<8x32xf32, #tpu.memory_space<vmem>>, vector<8x32xf32>,
    %c0_85 = arith.constant 0 : index
    %c0_86 = arith.constant 0 : index
    %242 = vector.load %arg9[%c0_85, %c0_86] : memref<8x32xf32, #tpu.memory_space<vmem>>, vector<8x32xf32>
    tpu.vector_store %arg9[%c0_85, %c0_86], %233 {strides = array<i32>} : memref<8x32xf32, #tpu.memory_space<vmem>>, vector<8x32xf32>,
    return
  }
  func.func @transform_0(%arg0: i32, %arg1: i32) -> (i32, i32, i32) {
    %c0_i32 = arith.constant 0 : i32
    %c0_i32_0 = arith.constant 0 : i32
    return %arg0, %arg1, %c0_i32 : i32, i32, i32
  }
  func.func @transform_1(%arg0: i32, %arg1: i32) -> (i32, i32, i32) {
    %c0_i32 = arith.constant 0 : i32
    %c0_i32_0 = arith.constant 0 : i32
    %c0_i32_1 = arith.constant 0 : i32
    return %arg0, %c0_i32, %c0_i32_0 : i32, i32, i32
  }
  func.func @transform_2(%arg0: i32, %arg1: i32) -> (i32, i32, i32) {
    %c0_i32 = arith.constant 0 : i32
    %c0_i32_0 = arith.constant 0 : i32
    %c0_i32_1 = arith.constant 0 : i32
    return %arg0, %c0_i32, %c0_i32_0 : i32, i32, i32
  }
  func.func @transform_3(%arg0: i32, %arg1: i32) -> (i32, i32, i32) {
    %c0_i32 = arith.constant 0 : i32
    %c0_i32_0 = arith.constant 0 : i32
    %c0_i32_1 = arith.constant 0 : i32
    return %arg0, %c0_i32, %c0_i32_0 : i32, i32, i32
  }
  func.func @transform_4(%arg0: i32, %arg1: i32) -> (i32, i32, i32) {
    %c0_i32 = arith.constant 0 : i32
    %c0_i32_0 = arith.constant 0 : i32
    return %arg0, %arg1, %c0_i32 : i32, i32, i32
  }
}

</mosaic_0001>

<llo_original>
// kernel: encoder_forward.3
$region0: #{encoder_forward.3}
  #allocation0 [shape = 'u32[]', space=smem, size = 0x4, offset = 0x4, fixed_abs, tag = 'smem constant byte address 0x4 - core index']
  #allocation1 [shape = 'u32[144,128]{1,0:T(1,128)}', space=vmem, size = 0x12000, scoped, tag = 'internal scratch']
  %s0 = inlined_call_operand.vmem [shape: f32[8,32], index: 0, kind: input, shape index: {}]
  %s1 = inlined_call_operand.vmem [shape: f32[8,32], index: 1, kind: input, shape index: {}]
  %s2 = inlined_call_operand.vmem [shape: f32[32,32], index: 2, kind: input, shape index: {}]
  %s3 = inlined_call_operand.vmem [shape: f32[32,32], index: 3, kind: input, shape index: {}]
  %s4 = inlined_call_operand.vmem [shape: f32[1,32], index: 4, kind: input, shape index: {}]
  %s5 = inlined_call_operand.vmem [shape: f32[8,32], index: 5, kind: output, shape index: {}]
  %s6 = sld [smem:[#allocation0]]
  $region30: #{encoder_forward.3} parent=0
    _
  %s8 = ssub.s32 1, %s6
  %s9 = scalar_select 0, %s8, %s6
  // Predicated region
  $region2: #{encoder_forward.3} parent=0 // pred_check
    _
  $region3: #{encoder_forward.3} parent=0 // pred_check_branch
    %11 = sbr.rel (0) target = $region5
  $region4: #{encoder_forward.3} parent=0 // pred_region
    _
  $region5: #{encoder_forward.3} parent=0 // pred_fallthru
    _
  // Predicated region
  $region6: #{encoder_forward.3} parent=0 // pred_check
    _
  $region7: #{encoder_forward.3} parent=0 // pred_check_branch
    %13 = sbr.rel (0) target = $region9
  $region8: #{encoder_forward.3} parent=0 // pred_region
    _
  $region9: #{encoder_forward.3} parent=0 // pred_fallthru
    _
  // Predicated region
  $region10: #{encoder_forward.3} parent=0 // pred_check
    _
  $region11: #{encoder_forward.3} parent=0 // pred_check_branch
    %15 = sbr.rel (0) target = $region13
  $region12: #{encoder_forward.3} parent=0 // pred_region
    _
  $region13: #{encoder_forward.3} parent=0 // pred_fallthru
    _
  // Predicated region
  $region14: #{encoder_forward.3} parent=0 // pred_check
    _
  $region15: #{encoder_forward.3} parent=0 // pred_check_branch
    %17 = sbr.rel (0) target = $region17
  $region16: #{encoder_forward.3} parent=0 // pred_region
    _
  $region17: #{encoder_forward.3} parent=0 // pred_fallthru
    _
  // Predicated region
  $region18: #{encoder_forward.3} parent=0 // pred_check
    _
  $region19: #{encoder_forward.3} parent=0 // pred_check_branch
    %19 = sbr.rel (0) target = $region21
  $region20: #{encoder_forward.3} parent=0 // pred_region
    _
  $region21: #{encoder_forward.3} parent=0 // pred_fallthru
    _
  %v20 = vld [vmem:[%s0] sm:$0xff]
  %v21 = vld [vmem:[%s2] sm:$0xff]
  %v22 = vld [vmem:[%s2 + $0x8] sm:$0xff]
  %v23 = vld [vmem:[%s2 + $0x10] sm:$0xff]
  %v24 = vld [vmem:[%s2 + $0x18] sm:$0xff]
  %v25 = vld [vmem:[%s1] sm:$0xff]
  %v26 = vld [vmem:[%s3] sm:$0xff]
  %v27 = vld [vmem:[%s3 + $0x8] sm:$0xff]
  %v28 = vld [vmem:[%s3 + $0x10] sm:$0xff]
  %v29 = vld [vmem:[%s3 + $0x18] sm:$0xff]
  %vm30 = vcmask 261120
  %v32 = vsel %vm30, %v25, 0
  %34 = vmatprep.subr.mxu0 0.0
  %35 = vmatpush1.msra.mxu0 %v26
  %36 = vmatprep.subr.mxu0 0.0
  %37 = vmatpush1.msra.mxu0 %v27
  %38 = vmatprep.subr.mxu0 0.0
  %39 = vmatpush1.msra.mxu0 %v28
  %40 = vmatprep.subr.mxu0 0.0
  %41 = vmatpush1.msra.mxu0 %v29
  %42 = vmatprep.subr.mxu0 0.0
  %43 = vmatpush1.msra.mxu0 0.0
  %44 = vmatprep.subr.mxu0 0.0
  %45 = vmatpush1.msra.mxu0 0.0
  %46 = vmatprep.subr.mxu0 0.0
  %47 = vmatpush1.msra.mxu0 0.0
  %48 = vmatprep.subr.mxu0 0.0
  %49 = vmatpush1.msra.mxu0 0.0
  %50 = vmatprep.subr.mxu0 0.0
  %51 = vmatpush1.msra.mxu0 0.0
  %52 = vmatprep.subr.mxu0 0.0
  %53 = vmatpush1.msra.mxu0 0.0
  %54 = vmatprep.subr.mxu0 0.0
  %55 = vmatpush1.msra.mxu0 0.0
  %56 = vmatprep.subr.mxu0 0.0
  %57 = vmatpush1.msra.mxu0 0.0
  %58 = vmatprep.subr.mxu0 0.0
  %59 = vmatpush1.msra.mxu0 0.0
  %60 = vmatprep.subr.mxu0 0.0
  %61 = vmatpush1.msra.mxu0 0.0
  %62 = vmatprep.subr.mxu0 0.0
  %63 = vmatpush1.msra.mxu0 0.0
  %64 = vmatprep.subr.mxu0 0.0
  %65 = vmatpush1.msra.mxu0 0.0
  %66 = vmatprep.subr.mxu0 0.0
  %67 = vmatpush1.msra.mxu0 0.0
  %68 = vmatprep.subr.mxu0 0.0
  %69 = vmatpush1.msra.mxu0 0.0
  %70 = vmatprep.subr.mxu0 0.0
  %71 = vmatpush1.msra.mxu0 0.0
  %72 = vmatprep.subr.mxu0 0.0
  %73 = vmatpush1.msra.mxu0 0.0
  %74 = vmatprep.subr.mxu0 0.0
  %75 = vmatpush1.msra.mxu0 0.0
  %76 = vmatprep.subr.mxu0 0.0
  %77 = vmatpush1.msra.mxu0 0.0
  %78 = vmatprep.subr.mxu0 0.0
  %79 = vmatpush1.msra.mxu0 0.0
  %80 = vmatprep.subr.mxu0 0.0
  %81 = vmatpush1.msra.mxu0 0.0
  %82 = vmatprep.subr.mxu0 0.0
  %83 = vmatpush1.msra.mxu0 0.0
  %84 = vmatprep.subr.mxu0 0.0
  %85 = vmatpush1.msra.mxu0 0.0
  %86 = vmatprep.subr.mxu0 0.0
  %87 = vmatpush1.msra.mxu0 0.0
  %88 = vmatprep.subr.mxu0 0.0
  %89 = vmatpush1.msra.mxu0 0.0
  %90 = vmatprep.subr.mxu0 0.0
  %91 = vmatpush1.msra.mxu0 0.0
  %92 = vmatprep.subr.mxu0 0.0
  %93 = vmatpush1.msra.mxu0 0.0
  %94 = vmatprep.subr.mxu0 0.0
  %95 = vmatpush1.msra.mxu0 0.0
  %96 = vmatprep.subr.mxu0 0.0
  %97 = vmatpush1.msra.mxu0 0.0
  %98 = vmatprep.mubr.f32.mxu0 0.0
  %99 = vmatmul.mubr.f32.gmra.mrb[0].mxu0 %v32
  %v100 = vpop.f32.mrb[0].mxu0
  %v101 = vadd.f32 0.0, %v100
  %v102 = vpop.f32.mrb[0].mxu0
  %103 = vdwg.mxu0
  %v105 = vsel %vm30, %v20, 0
  %107 = vmatprep.subr.mxu0 0.0
  %108 = vmatpush1.msra.mxu0 %v21
  %109 = vmatprep.subr.mxu0 0.0
  %110 = vmatpush1.msra.mxu0 %v22
  %111 = vmatprep.subr.mxu0 0.0
  %112 = vmatpush1.msra.mxu0 %v23
  %113 = vmatprep.subr.mxu0 0.0
  %114 = vmatpush1.msra.mxu0 %v24
  %115 = vmatprep.subr.mxu0 0.0
  %116 = vmatpush1.msra.mxu0 0.0
  %117 = vmatprep.subr.mxu0 0.0
  %118 = vmatpush1.msra.mxu0 0.0
  %119 = vmatprep.subr.mxu0 0.0
  %120 = vmatpush1.msra.mxu0 0.0
  %121 = vmatprep.subr.mxu0 0.0
  %122 = vmatpush1.msra.mxu0 0.0
  %123 = vmatprep.subr.mxu0 0.0
  %124 = vmatpush1.msra.mxu0 0.0
  %125 = vmatprep.subr.mxu0 0.0
  %126 = vmatpush1.msra.mxu0 0.0
  %127 = vmatprep.subr.mxu0 0.0
  %128 = vmatpush1.msra.mxu0 0.0
  %129 = vmatprep.subr.mxu0 0.0
  %130 = vmatpush1.msra.mxu0 0.0
  %131 = vmatprep.subr.mxu0 0.0
  %132 = vmatpush1.msra.mxu0 0.0
  %133 = vmatprep.subr.mxu0 0.0
  %134 = vmatpush1.msra.mxu0 0.0
  %135 = vmatprep.subr.mxu0 0.0
  %136 = vmatpush1.msra.mxu0 0.0
  %137 = vmatprep.subr.mxu0 0.0
  %138 = vmatpush1.msra.mxu0 0.0
  %139 = vmatprep.subr.mxu0 0.0
  %140 = vmatpush1.msra.mxu0 0.0
  %141 = vmatprep.subr.mxu0 0.0
  %142 = vmatpush1.msra.mxu0 0.0
  %143 = vmatprep.subr.mxu0 0.0
  %144 = vmatpush1.msra.mxu0 0.0
  %145 = vmatprep.subr.mxu0 0.0
  %146 = vmatpush1.msra.mxu0 0.0
  %147 = vmatprep.subr.mxu0 0.0
  %148 = vmatpush1.msra.mxu0 0.0
  %149 = vmatprep.subr.mxu0 0.0
  %150 = vmatpush1.msra.mxu0 0.0
  %151 = vmatprep.subr.mxu0 0.0
  %152 = vmatpush1.msra.mxu0 0.0
  %153 = vmatprep.subr.mxu0 0.0
  %154 = vmatpush1.msra.mxu0 0.0
  %155 = vmatprep.subr.mxu0 0.0
  %156 = vmatpush1.msra.mxu0 0.0
  %157 = vmatprep.subr.mxu0 0.0
  %158 = vmatpush1.msra.mxu0 0.0
  %159 = vmatprep.subr.mxu0 0.0
  %160 = vmatpush1.msra.mxu0 0.0
  %161 = vmatprep.subr.mxu0 0.0
  %162 = vmatpush1.msra.mxu0 0.0
  %163 = vmatprep.subr.mxu0 0.0
  %164 = vmatpush1.msra.mxu0 0.0
  %165 = vmatprep.subr.mxu0 0.0
  %166 = vmatpush1.msra.mxu0 0.0
  %167 = vmatprep.subr.mxu0 0.0
  %168 = vmatpush1.msra.mxu0 0.0
  %169 = vmatprep.subr.mxu0 0.0
  %170 = vmatpush1.msra.mxu0 0.0
  %171 = vmatprep.mubr.f32.mxu0 0.0
  %172 = vmatmul.mubr.f32.gmra.mrb[0].mxu0 %v105
  %v173 = vpop.f32.mrb[0].mxu0
  %v174 = vadd.f32 %v101, %v173
  %v175 = vpop.f32.mrb[0].mxu0
  %176 = vdwg.mxu0
  %v177 = vld [vmem:[%s4] sm:$0x1]
  %v179 = vlaneseq
  %v180 = vshrl.u32 %v179, 7
  %v181 = vsub.s32 0, %v180
  %v182 = vrot.slane %v177, %v181
  %v184 = vadd.f32 %v174, %v182
  %v185 = vtanh.pop %v184
  %186 = vst.msk [vmem:[%s5] sm:$0xff] %vm30, %v185
  // Predicated region
  $region22: #{encoder_forward.3} parent=0 // pred_check
    _
  $region23: #{encoder_forward.3} parent=0 // pred_check_branch
    %188 = sbr.rel (0) target = $region25
  $region24: #{encoder_forward.3} parent=0 // pred_region
    _
  $region25: #{encoder_forward.3} parent=0 // pred_fallthru
    _
  // Predicated region
  $region26: #{encoder_forward.3} parent=0 // pred_check
    _
  $region27: #{encoder_forward.3} parent=0 // pred_check_branch
    %190 = sbr.rel (0) target = $region29
  $region28: #{encoder_forward.3} parent=0 // pred_region
    _
  $region29: #{encoder_forward.3} parent=0 // pred_fallthru
    _

// kernel: encoder_forward.2
$region0: #{encoder_forward.2}
  #allocation0 [shape = 'u32[]', space=smem, size = 0x4, offset = 0x4, fixed_abs, tag = 'smem constant byte address 0x4 - core index']
  #allocation1 [shape = 'u32[144,128]{1,0:T(1,128)}', space=vmem, size = 0x12000, scoped, tag = 'internal scratch']
  #allocation2 [shape = 'f32[64,128]{1,0:T(8,128)}', space=vmem, size = 0x8000, scoped, tag = 'scratch operand']
  #allocation3 [shape = 'f32[8,32]{1,0:T(8,128)}', space=vmem, size = 0x1000, scoped, tag = 'scratch operand']
  #allocation4 [shape = 'f32[8,32]{1,0:T(8,128)}', space=vmem, size = 0x1000, scoped, tag = 'scratch operand']
  %s0 = inlined_call_operand.vmem [shape: f32[2,64,32], index: 0, kind: input, shape index: {}]
  %s1 = inlined_call_operand.vmem [shape: f32[2,32,128], index: 1, kind: input, shape index: {}]
  %s2 = inlined_call_operand.vmem [shape: f32[2,1,128], index: 2, kind: input, shape index: {}]
  %s3 = inlined_call_operand.vmem [shape: f32[2,32,128], index: 3, kind: input, shape index: {}]
  %s4 = inlined_call_operand.vmem [shape: f32[2,64,32], index: 4, kind: output, shape index: {}]
  %s5 = sld [smem:[#allocation0]]
  $region53: #{encoder_forward.2} parent=0
    _
  %s7 = ssub.s32 1, %s5
  %s8 = scalar_select 0, %s7, %s5
  loop: start=0, step=1, limit=4
  $region2: #{encoder_forward.2} parent=0 // loop_pre_header
    _
  $region3: #{encoder_forward.2} parent=0 // loop_header
    %s10 = sphi 0, %s14
    %p11 = scmp.ge.s32.totalorder %s10, 4
    %s17 = sphi 0, %s29
    %s18 = sphi 0, %s25
    %s19 = sphi 0, %s17
    %s20 = sphi 0, %s18
    %s21 = sphi 0, %s19
    %s22 = sphi 0, %s20
    %s34 = sphi 0, %s36
    %s37 = sphi 0, %s34
    %s38 = sphi 0, %s37
    %s54 = sphi 0, %s38
    %s60 = sphi 0, %s62
    %s63 = sphi 0, %s60
    %s64 = sphi 0, %s63
    %s80 = sphi 0, %s64
    %s86 = sphi 0, %s88
    %s89 = sphi 0, %s86
    %s90 = sphi 0, %s89
    %s106 = sphi 0, %s90
    %s112 = sphi 0, %s114
    %s115 = sphi 0, %s112
    %s116 = sphi 0, %s115
    %s132 = sphi 0, %s116
    %s140 = sphi 0, %s142
    %s143 = sphi 0, %s140
    %s144 = sphi 0, %s143
    %s160 = sphi 0, %s144
  $region4: #{encoder_forward.2} parent=0 // loop_header_branch
    %13 = sbr.rel (%p11) target = $region8
  $region5: #{encoder_forward.2} parent=0 // loop_body
    %s15 = ssub.s32 %s10, 1
    %s16 = ssub.s32 %s10, 2
    %s23 = sadd.s32 1, %s18
    %p24 = scmp.ge.s32.totalorder %s23, 1
    %s25 = scalar_select %p24, 0, %s23
    %s26 = sadd.s32 1, %s17
    %s27 = scalar_select %p24, %s26, %s17
    %p28 = scmp.ge.s32.totalorder %s27, 2
    %s29 = scalar_select %p28, 0, %s27
    %s30 = ssub.s32 %s17, %s29
    %s31 = ssub.s32 %s18, %s25
    %s32 = sor.u32 %s30, %s31
    %p33 = scmp.eq.s32.totalorder %s32, 0
    %s35 = sadd.s32 %s34, 1
    %s36 = scalar_select %p33, %s34, %s35
    %p39 = pneg %p33
    %p40 = scmp.eq.s32.totalorder %s10, 1
    %p41 = por %p39, %p40
    %p42 = scmp.ne.s32.totalorder %s34, %s37
    %p43 = scmp.eq.s32.totalorder %s10, 0
    %p44 = por %p42, %p43
    %p45 = scmp.ne.s32.totalorder %s34, %s37
    %p46 = scmp.eq.s32.totalorder %s15, 1
    %p47 = por %p45, %p46
    %p48 = scmp.ne.s32.totalorder %s37, %s38
    %p49 = scmp.eq.s32.totalorder %s15, 0
    %p50 = por %p48, %p49
    %p51 = scmp.ne.s32.totalorder %s37, %s38
    %p52 = scmp.eq.s32.totalorder %s16, 1
    %p53 = por %p51, %p52
    %p55 = scmp.ne.s32.totalorder %s38, %s54
    %p56 = scmp.eq.s32.totalorder %s16, 0
    %p57 = por %p55, %p56
    %s58 = ssub.s32 %s17, %s29
    %p59 = scmp.eq.s32.totalorder %s58, 0
    %s61 = sadd.s32 %s60, 1
    %s62 = scalar_select %p59, %s60, %s61
    %p65 = pneg %p59
    %p66 = scmp.eq.s32.totalorder %s10, 1
    %p67 = por %p65, %p66
    %p68 = scmp.ne.s32.totalorder %s60, %s63
    %p69 = scmp.eq.s32.totalorder %s10, 0
    %p70 = por %p68, %p69
    %p71 = scmp.ne.s32.totalorder %s60, %s63
    %p72 = scmp.eq.s32.totalorder %s15, 1
    %p73 = por %p71, %p72
    %p74 = scmp.ne.s32.totalorder %s63, %s64
    %p75 = scmp.eq.s32.totalorder %s15, 0
    %p76 = por %p74, %p75
    %p77 = scmp.ne.s32.totalorder %s63, %s64
    %p78 = scmp.eq.s32.totalorder %s16, 1
    %p79 = por %p77, %p78
    %p81 = scmp.ne.s32.totalorder %s64, %s80
    %p82 = scmp.eq.s32.totalorder %s16, 0
    %p83 = por %p81, %p82
    %s84 = ssub.s32 %s17, %s29
    %p85 = scmp.eq.s32.totalorder %s84, 0
    %s87 = sadd.s32 %s86, 1
    %s88 = scalar_select %p85, %s86, %s87
    %p91 = pneg %p85
    %p92 = scmp.eq.s32.totalorder %s10, 1
    %p93 = por %p91, %p92
    %p94 = scmp.ne.s32.totalorder %s86, %s89
    %p95 = scmp.eq.s32.totalorder %s10, 0
    %p96 = por %p94, %p95
    %p97 = scmp.ne.s32.totalorder %s86, %s89
    %p98 = scmp.eq.s32.totalorder %s15, 1
    %p99 = por %p97, %p98
    %p100 = scmp.ne.s32.totalorder %s89, %s90
    %p101 = scmp.eq.s32.totalorder %s15, 0
    %p102 = por %p100, %p101
    %p103 = scmp.ne.s32.totalorder %s89, %s90
    %p104 = scmp.eq.s32.totalorder %s16, 1
    %p105 = por %p103, %p104
    %p107 = scmp.ne.s32.totalorder %s90, %s106
    %p108 = scmp.eq.s32.totalorder %s16, 0
    %p109 = por %p107, %p108
    %s110 = ssub.s32 %s17, %s29
    %p111 = scmp.eq.s32.totalorder %s110, 0
    %s113 = sadd.s32 %s112, 1
    %s114 = scalar_select %p111, %s112, %s113
    %p117 = pneg %p111
    %p118 = scmp.eq.s32.totalorder %s10, 1
    %p119 = por %p117, %p118
    %p120 = scmp.ne.s32.totalorder %s112, %s115
    %p121 = scmp.eq.s32.totalorder %s10, 0
    %p122 = por %p120, %p121
    %p123 = scmp.ne.s32.totalorder %s112, %s115
    %p124 = scmp.eq.s32.totalorder %s15, 1
    %p125 = por %p123, %p124
    %p126 = scmp.ne.s32.totalorder %s115, %s116
    %p127 = scmp.eq.s32.totalorder %s15, 0
    %p128 = por %p126, %p127
    %p129 = scmp.ne.s32.totalorder %s115, %s116
    %p130 = scmp.eq.s32.totalorder %s16, 1
    %p131 = por %p129, %p130
    %p133 = scmp.ne.s32.totalorder %s116, %s132
    %p134 = scmp.eq.s32.totalorder %s16, 0
    %p135 = por %p133, %p134
    %s136 = ssub.s32 %s17, %s29
    %s137 = ssub.s32 %s18, %s25
    %s138 = sor.u32 %s136, %s137
    %p139 = scmp.eq.s32.totalorder %s138, 0
    %s141 = sadd.s32 %s140, 1
    %s142 = scalar_select %p139, %s140, %s141
    %p145 = pneg %p139
    %p146 = scmp.eq.s32.totalorder %s10, 1
    %p147 = por %p145, %p146
    %p148 = scmp.ne.s32.totalorder %s140, %s143
    %p149 = scmp.eq.s32.totalorder %s10, 0
    %p150 = por %p148, %p149
    %p151 = scmp.ne.s32.totalorder %s140, %s143
    %p152 = scmp.eq.s32.totalorder %s15, 1
    %p153 = por %p151, %p152
    %p154 = scmp.ne.s32.totalorder %s143, %s144
    %p155 = scmp.eq.s32.totalorder %s15, 0
    %p156 = por %p154, %p155
    %p157 = scmp.ne.s32.totalorder %s143, %s144
    %p158 = scmp.eq.s32.totalorder %s16, 1
    %p159 = por %p157, %p158
    %p161 = scmp.ne.s32.totalorder %s144, %s160
    %p162 = scmp.eq.s32.totalorder %s16, 0
    %p163 = por %p161, %p162
    %p164 = scmp.le.s32.totalorder 1, %s10
    %p165 = scmp.lt.s32.totalorder %s10, 3
    %p166 = pnand %p164, %p165
    %p167 = pneg %p166
    // Predicated region
    $region9: #{encoder_forward.2} parent=5 // pred_check
      _
    $region10: #{encoder_forward.2} parent=5 // pred_check_branch
      %169 = sbr.rel (%p166) target = $region12
    $region11: #{encoder_forward.2} parent=5 // pred_region
      %s170 = ssub.s32 %s10, 1
    $region12: #{encoder_forward.2} parent=5 // pred_fallthru
      _
    %p171 = scmp.lt.s32.totalorder %s10, 2
    // Predicated region
    $region13: #{encoder_forward.2} parent=5 // pred_check
      %p172 = pneg %p171
    $region14: #{encoder_forward.2} parent=5 // pred_check_branch
      %174 = sbr.rel (%p172) target = $region16
    $region15: #{encoder_forward.2} parent=5 // pred_region
      // Predicated region
      $region17: #{encoder_forward.2} parent=15 // pred_check
        %p175 = pneg %p44
      $region18: #{encoder_forward.2} parent=15 // pred_check_branch
        %177 = sbr.rel (%p175) target = $region20
      $region19: #{encoder_forward.2} parent=15 // pred_region
        %s178 = smul.u32 8, %s18
        %p179 = scmp.lt.s32.totalorder %s17, 1
        %s180 = scalar_select %p179, %s17, 1
        %p181 = scmp.lt.s32.totalorder %s178, 7
        %s182 = scalar_select %p181, %s178, 7
        %s183 = smul.addr %s180, 8
        %s184 = sadd.s32 %s182, %s183
        %s185 = smul.addr %s184, 8
        %s186 = scalar_lea.vmem %s0, %s185
        %s187 = smul.u32 8, %s18
      $region20: #{encoder_forward.2} parent=15 // pred_fallthru
        _
      // Predicated region
      $region21: #{encoder_forward.2} parent=15 // pred_check
        %p188 = pneg %p70
      $region22: #{encoder_forward.2} parent=15 // pred_check_branch
        %190 = sbr.rel (%p188) target = $region24
      $region23: #{encoder_forward.2} parent=15 // pred_region
        %p191 = scmp.lt.s32.totalorder %s17, 1
        %s192 = scalar_select %p191, %s17, 1
        %s193 = smul.addr %s192, 4
        %s194 = smul.addr %s193, 8
        %s195 = scalar_lea.vmem %s1, %s194
      $region24: #{encoder_forward.2} parent=15 // pred_fallthru
        _
      // Predicated region
      $region25: #{encoder_forward.2} parent=15 // pred_check
        %p196 = pneg %p96
      $region26: #{encoder_forward.2} parent=15 // pred_check_branch
        %198 = sbr.rel (%p196) target = $region28
      $region27: #{encoder_forward.2} parent=15 // pred_region
        %p199 = scmp.lt.s32.totalorder %s17, 1
        %s200 = scalar_select %p199, %s17, 1
        %s201 = scalar_lea.vmem %s2, %s200
      $region28: #{encoder_forward.2} parent=15 // pred_fallthru
        _
      // Predicated region
      $region29: #{encoder_forward.2} parent=15 // pred_check
        %p202 = pneg %p122
      $region30: #{encoder_forward.2} parent=15 // pred_check_branch
        %204 = sbr.rel (%p202) target = $region32
      $region31: #{encoder_forward.2} parent=15 // pred_region
        %p205 = scmp.lt.s32.totalorder %s17, 1
        %s206 = scalar_select %p205, %s17, 1
        %s207 = smul.addr %s206, 4
        %s208 = smul.addr %s207, 8
        %s209 = scalar_lea.vmem %s3, %s208
      $region32: #{encoder_forward.2} parent=15 // pred_fallthru
        _
    $region16: #{encoder_forward.2} parent=5 // pred_fallthru
      _
    %p210 = scmp.le.s32.totalorder 1, %s10
    %p211 = scmp.lt.s32.totalorder %s10, 3
    %p212 = pnand %p210, %p211
    %p213 = pneg %p212
    // Predicated region
    $region33: #{encoder_forward.2} parent=5 // pred_check
      _
    $region34: #{encoder_forward.2} parent=5 // pred_check_branch
      %215 = sbr.rel (%p212) target = $region36
    $region35: #{encoder_forward.2} parent=5 // pred_region
      %s216 = ssub.s32 %s10, 1
      %s217 = smul.u32 8, %s20
      %p218 = scmp.lt.s32.totalorder %s19, 1
      %s219 = scalar_select %p218, %s19, 1
      %p220 = scmp.lt.s32.totalorder %s217, 7
      %s221 = scalar_select %p220, %s217, 7
      %s222 = smul.addr %s219, 8
      %s223 = sadd.s32 %s221, %s222
      %s224 = smul.addr %s223, 8
      %s225 = scalar_lea.vmem %s0, %s224
      %p226 = pneg %p50
      %p227 = pneg %p47
      %p228 = scmp.lt.s32.totalorder %s19, 1
      %s229 = scalar_select %p228, %s19, 1
      %s230 = smul.addr %s229, 4
      %s231 = smul.addr %s230, 8
      %s232 = scalar_lea.vmem %s1, %s231
      %p233 = pneg %p76
      %p234 = pneg %p73
      %p235 = scmp.lt.s32.totalorder %s19, 1
      %s236 = scalar_select %p235, %s19, 1
      %s237 = scalar_lea.vmem %s2, %s236
      %p238 = pneg %p102
      %p239 = pneg %p99
      %p240 = scmp.lt.s32.totalorder %s19, 1
      %s241 = scalar_select %p240, %s19, 1
      %s242 = smul.addr %s241, 4
      %s243 = smul.addr %s242, 8
      %s244 = scalar_lea.vmem %s3, %s243
      %p245 = pneg %p128
      %p246 = pneg %p125
      %p247 = pneg %p156
      %p248 = pneg %p153
      %s249 = smul.u32 8, %s20
      %p250 = scmp.lt.s32.totalorder %s19, 1
      %s251 = scalar_select %p250, %s19, 1
      %p252 = scmp.lt.s32.totalorder %s249, 7
      %s253 = scalar_select %p252, %s249, 7
      %s254 = smul.addr %s251, 8
      %s255 = sadd.s32 %s253, %s254
      %s256 = smul.addr %s255, 8
      %s257 = scalar_lea.vmem %s4, %s256
      %s258 = smul.u32 8, %s20
      %p259 = scmp.lt.s32.totalorder %s19, 1
      %s260 = scalar_select %p259, %s19, 1
      %p261 = scmp.lt.s32.totalorder %s258, 7
      %s262 = scalar_select %p261, %s258, 7
      %s263 = smul.addr %s260, 8
      %s264 = sadd.s32 %s262, %s263
      %s265 = smul.addr %s264, 8
      %s266 = scalar_lea.vmem %s0, %s265
      %s267 = smul.u32 8, %s20
      %p268 = scmp.lt.s32.totalorder %s19, 1
      %s269 = scalar_select %p268, %s19, 1
      %s270 = smul.addr %s269, 4
      %s271 = smul.addr %s270, 8
      %s272 = scalar_lea.vmem %s1, %s271
      %p273 = scmp.lt.s32.totalorder %s19, 1
      %s274 = scalar_select %p273, %s19, 1
      %s275 = scalar_lea.vmem %s2, %s274
      %p276 = scmp.lt.s32.totalorder %s19, 1
      %s277 = scalar_select %p276, %s19, 1
      %s278 = smul.addr %s277, 4
      %s279 = smul.addr %s278, 8
      %s280 = scalar_lea.vmem %s3, %s279
      %s281 = smul.u32 8, %s20
      %p282 = scmp.lt.s32.totalorder %s19, 1
      %s283 = scalar_select %p282, %s19, 1
      %p284 = scmp.lt.s32.totalorder %s281, 7
      %s285 = scalar_select %p284, %s281, 7
      %s286 = smul.addr %s283, 8
      %s287 = sadd.s32 %s285, %s286
      %s288 = smul.addr %s287, 8
      %s289 = scalar_lea.vmem %s4, %s288
      %s290 = smul.u32 8, %s20
      %v291 = vld [vmem:[%s266] sm:$0xff]
      %v292 = vld [vmem:[%s266 + $0x8] sm:$0xff]
      %v293 = vld [vmem:[%s266 + $0x10] sm:$0xff]
      %v294 = vld [vmem:[%s266 + $0x18] sm:$0xff]
      %v295 = vld [vmem:[%s266 + $0x20] sm:$0xff]
      %v296 = vld [vmem:[%s266 + $0x28] sm:$0xff]
      %v297 = vld [vmem:[%s266 + $0x30] sm:$0xff]
      %v298 = vld [vmem:[%s266 + $0x38] sm:$0xff]
      %v299 = vld [vmem:[%s272] sm:$0xff]
      %v300 = vld [vmem:[%s272 + $0x8] sm:$0xff]
      %v301 = vld [vmem:[%s272 + $0x10] sm:$0xff]
      %v302 = vld [vmem:[%s272 + $0x18] sm:$0xff]
      %v303 = vld [vmem:[%s275] sm:$0x1]
      %v305 = vlaneseq
      %v306 = vshrl.u32 %v305, 7
      %v307 = vsub.s32 0, %v306
      %v308 = vrot.slane %v303, %v307
      %vm310 = vcmask 261120
      %v312 = vsel %vm310, %v291, 0
      %v315 = vsel %vm310, %v292, 0
      %v318 = vsel %vm310, %v293, 0
      %v321 = vsel %vm310, %v294, 0
      %v324 = vsel %vm310, %v295, 0
      %v327 = vsel %vm310, %v296, 0
      %v330 = vsel %vm310, %v297, 0
      %v333 = vsel %vm310, %v298, 0
      %335 = vmatprep.subr.mxu0 0.0
      %336 = vmatpush1.msra.mxu0 %v299
      %337 = vmatprep.subr.mxu0 0.0
      %338 = vmatpush1.msra.mxu0 %v300
      %339 = vmatprep.subr.mxu0 0.0
      %340 = vmatpush1.msra.mxu0 %v301
      %341 = vmatprep.subr.mxu0 0.0
      %342 = vmatpush1.msra.mxu0 %v302
      %343 = vmatprep.subr.mxu0 0.0
      %344 = vmatpush1.msra.mxu0 0.0
      %345 = vmatprep.subr.mxu0 0.0
      %346 = vmatpush1.msra.mxu0 0.0
      %347 = vmatprep.subr.mxu0 0.0
      %348 = vmatpush1.msra.mxu0 0.0
      %349 = vmatprep.subr.mxu0 0.0
      %350 = vmatpush1.msra.mxu0 0.0
      %351 = vmatprep.subr.mxu0 0.0
      %352 = vmatpush1.msra.mxu0 0.0
      %353 = vmatprep.subr.mxu0 0.0
      %354 = vmatpush1.msra.mxu0 0.0
      %355 = vmatprep.subr.mxu0 0.0
      %356 = vmatpush1.msra.mxu0 0.0
      %357 = vmatprep.subr.mxu0 0.0
      %358 = vmatpush1.msra.mxu0 0.0
      %359 = vmatprep.subr.mxu0 0.0
      %360 = vmatpush1.msra.mxu0 0.0
      %361 = vmatprep.subr.mxu0 0.0
      %362 = vmatpush1.msra.mxu0 0.0
      %363 = vmatprep.subr.mxu0 0.0
      %364 = vmatpush1.msra.mxu0 0.0
      %365 = vmatprep.subr.mxu0 0.0
      %366 = vmatpush1.msra.mxu0 0.0
      %367 = vmatprep.subr.mxu0 0.0
      %368 = vmatpush1.msra.mxu0 0.0
      %369 = vmatprep.subr.mxu0 0.0
      %370 = vmatpush1.msra.mxu0 0.0
      %371 = vmatprep.subr.mxu0 0.0
      %372 = vmatpush1.msra.mxu0 0.0
      %373 = vmatprep.subr.mxu0 0.0
      %374 = vmatpush1.msra.mxu0 0.0
      %375 = vmatprep.subr.mxu0 0.0
      %376 = vmatpush1.msra.mxu0 0.0
      %377 = vmatprep.subr.mxu0 0.0
      %378 = vmatpush1.msra.mxu0 0.0
      %379 = vmatprep.subr.mxu0 0.0
      %380 = vmatpush1.msra.mxu0 0.0
      %381 = vmatprep.subr.mxu0 0.0
      %382 = vmatpush1.msra.mxu0 0.0
      %383 = vmatprep.subr.mxu0 0.0
      %384 = vmatpush1.msra.mxu0 0.0
      %385 = vmatprep.subr.mxu0 0.0
      %386 = vmatpush1.msra.mxu0 0.0
      %387 = vmatprep.subr.mxu0 0.0
      %388 = vmatpush1.msra.mxu0 0.0
      %389 = vmatprep.subr.mxu0 0.0
      %390 = vmatpush1.msra.mxu0 0.0
      %391 = vmatprep.subr.mxu0 0.0
      %392 = vmatpush1.msra.mxu0 0.0
      %393 = vmatprep.subr.mxu0 0.0
      %394 = vmatpush1.msra.mxu0 0.0
      %395 = vmatprep.subr.mxu0 0.0
      %396 = vmatpush1.msra.mxu0 0.0
      %397 = vmatprep.subr.mxu0 0.0
      %398 = vmatpush1.msra.mxu0 0.0
      %399 = vmatprep.mubr.f32.mxu0 0.0
      %400 = vmatmul.mubr.f32.gmra.mrb[0].mxu0 %v312
      %v401 = vpop.f32.mrb[0].mxu0
      %v402 = vadd.f32 %v308, %v401
      %v403 = vpop.f32.mrb[0].mxu0
      %404 = vmatprep.mubr.f32.mxu0 0.0
      %405 = vmatmul.mubr.f32.gmra.mrb[0].mxu0 %v315
      %v406 = vpop.f32.mrb[0].mxu0
      %v407 = vadd.f32 %v308, %v406
      %v408 = vpop.f32.mrb[0].mxu0
      %409 = vmatprep.mubr.f32.mxu0 0.0
      %410 = vmatmul.mubr.f32.gmra.mrb[0].mxu0 %v318
      %v411 = vpop.f32.mrb[0].mxu0
      %v412 = vadd.f32 %v308, %v411
      %v413 = vpop.f32.mrb[0].mxu0
      %414 = vmatprep.mubr.f32.mxu0 0.0
      %415 = vmatmul.mubr.f32.gmra.mrb[0].mxu0 %v321
      %v416 = vpop.f32.mrb[0].mxu0
      %v417 = vadd.f32 %v308, %v416
      %v418 = vpop.f32.mrb[0].mxu0
      %419 = vmatprep.mubr.f32.mxu0 0.0
      %420 = vmatmul.mubr.f32.gmra.mrb[0].mxu0 %v324
      %v421 = vpop.f32.mrb[0].mxu0
      %v422 = vadd.f32 %v308, %v421
      %v423 = vpop.f32.mrb[0].mxu0
      %424 = vmatprep.mubr.f32.mxu0 0.0
      %425 = vmatmul.mubr.f32.gmra.mrb[0].mxu0 %v327
      %v426 = vpop.f32.mrb[0].mxu0
      %v427 = vadd.f32 %v308, %v426
      %v428 = vpop.f32.mrb[0].mxu0
      %429 = vmatprep.mubr.f32.mxu0 0.0
      %430 = vmatmul.mubr.f32.gmra.mrb[0].mxu0 %v330
      %v431 = vpop.f32.mrb[0].mxu0
      %v432 = vadd.f32 %v308, %v431
      %v433 = vpop.f32.mrb[0].mxu0
      %434 = vmatprep.mubr.f32.mxu0 0.0
      %435 = vmatmul.mubr.f32.gmra.mrb[0].mxu0 %v333
      %v436 = vpop.f32.mrb[0].mxu0
      %v437 = vadd.f32 %v308, %v436
      %v438 = vpop.f32.mrb[0].mxu0
      %439 = vdwg.mxu0
      %440 = vst [vmem:[#allocation2] sm:$0xff] %v402
      %441 = vst [vmem:[#allocation2 + $0x8] sm:$0xff] %v407
      %442 = vst [vmem:[#allocation2 + $0x10] sm:$0xff] %v412
      %443 = vst [vmem:[#allocation2 + $0x18] sm:$0xff] %v417
      %444 = vst [vmem:[#allocation2 + $0x20] sm:$0xff] %v422
      %445 = vst [vmem:[#allocation2 + $0x28] sm:$0xff] %v427
      %446 = vst [vmem:[#allocation2 + $0x30] sm:$0xff] %v432
      %447 = vst [vmem:[#allocation2 + $0x38] sm:$0xff] %v437
      %p448 = scmp.eq.s32.totalorder %s20, 0
      // Predicated region
      $region37: #{encoder_forward.2} parent=35 // pred_check
        %p449 = pneg %p448
      $region38: #{encoder_forward.2} parent=35 // pred_check_branch
        %451 = sbr.rel (%p449) target = $region40
      $region39: #{encoder_forward.2} parent=35 // pred_region
        %452 = vst.msk [vmem:[#allocation3] sm:$0xff] %vm310, 0.0
        %453 = vst.msk [vmem:[#allocation4] sm:$0xff] %vm310, 0.0
      $region40: #{encoder_forward.2} parent=35 // pred_fallthru
        _
      %v454 = vld [vmem:[%s280] sm:$0xff]
      %v455 = vld [vmem:[%s280 + $0x8] sm:$0xff]
      %v456 = vld [vmem:[%s280 + $0x10] sm:$0xff]
      %v457 = vld [vmem:[%s280 + $0x18] sm:$0xff]
      %v458 = vld [vmem:[#allocation3] sm:$0xff]
      %v459 = vld [vmem:[#allocation4] sm:$0xff]
      %v460 = vld [vmem:[#allocation2] sm:$0xff]
      %v462 = vsel %vm310, %v458, 0
      %464 = vmatprep.subr.mxu0 0.0
      %465 = vmatpush1.msra.mxu0 %v454
      %466 = vmatprep.subr.mxu0 0.0
      %467 = vmatpush1.msra.mxu0 %v455
      %468 = vmatprep.subr.mxu0 0.0
      %469 = vmatpush1.msra.mxu0 %v456
      %470 = vmatprep.subr.mxu0 0.0
      %471 = vmatpush1.msra.mxu0 %v457
      %472 = vmatprep.subr.mxu0 0.0
      %473 = vmatpush1.msra.mxu0 0.0
      %474 = vmatprep.subr.mxu0 0.0
      %475 = vmatpush1.msra.mxu0 0.0
      %476 = vmatprep.subr.mxu0 0.0
      %477 = vmatpush1.msra.mxu0 0.0
      %478 = vmatprep.subr.mxu0 0.0
      %479 = vmatpush1.msra.mxu0 0.0
      %480 = vmatprep.subr.mxu0 0.0
      %481 = vmatpush1.msra.mxu0 0.0
      %482 = vmatprep.subr.mxu0 0.0
      %483 = vmatpush1.msra.mxu0 0.0
      %484 = vmatprep.subr.mxu0 0.0
      %485 = vmatpush1.msra.mxu0 0.0
      %486 = vmatprep.subr.mxu0 0.0
      %487 = vmatpush1.msra.mxu0 0.0
      %488 = vmatprep.subr.mxu0 0.0
      %489 = vmatpush1.msra.mxu0 0.0
      %490 = vmatprep.subr.mxu0 0.0
      %491 = vmatpush1.msra.mxu0 0.0
      %492 = vmatprep.subr.mxu0 0.0
      %493 = vmatpush1.msra.mxu0 0.0
      %494 = vmatprep.subr.mxu0 0.0
      %495 = vmatpush1.msra.mxu0 0.0
      %496 = vmatprep.subr.mxu0 0.0
      %497 = vmatpush1.msra.mxu0 0.0
      %498 = vmatprep.subr.mxu0 0.0
      %499 = vmatpush1.msra.mxu0 0.0
      %500 = vmatprep.subr.mxu0 0.0
      %501 = vmatpush1.msra.mxu0 0.0
      %502 = vmatprep.subr.mxu0 0.0
      %503 = vmatpush1.msra.mxu0 0.0
      %504 = vmatprep.subr.mxu0 0.0
      %505 = vmatpush1.msra.mxu0 0.0
      %506 = vmatprep.subr.mxu0 0.0
      %507 = vmatpush1.msra.mxu0 0.0
      %508 = vmatprep.subr.mxu0 0.0
      %509 = vmatpush1.msra.mxu0 0.0
      %510 = vmatprep.subr.mxu0 0.0
      %511 = vmatpush1.msra.mxu0 0.0
      %512 = vmatprep.subr.mxu0 0.0
      %513 = vmatpush1.msra.mxu0 0.0
      %514 = vmatprep.subr.mxu0 0.0
      %515 = vmatpush1.msra.mxu0 0.0
      %516 = vmatprep.subr.mxu0 0.0
      %517 = vmatpush1.msra.mxu0 0.0
      %518 = vmatprep.subr.mxu0 0.0
      %519 = vmatpush1.msra.mxu0 0.0
      %520 = vmatprep.subr.mxu0 0.0
      %521 = vmatpush1.msra.mxu0 0.0
      %522 = vmatprep.subr.mxu0 0.0
      %523 = vmatpush1.msra.mxu0 0.0
      %524 = vmatprep.subr.mxu0 0.0
      %525 = vmatpush1.msra.mxu0 0.0
      %526 = vmatprep.subr.mxu0 0.0
      %527 = vmatpush1.msra.mxu0 0.0
      %528 = vmatprep.mubr.f32.mxu0 0.0
      %529 = vmatmul.mubr.f32.gmra.mrb[0].mxu0 %v462
      %v530 = vpop.f32.mrb[0].mxu0
      %v531 = vadd.f32 %v460, %v530
      %v532 = vpop.f32.mrb[0].mxu0
      %533 = vdwg.mxu0
      %v534 = vmul.f32 %v531, 0.5
      %v535 = vtanh.pop %v534
      %v536 = vmul.f32 %v535, 0.5
      %v537 = vadd.f32 %v536, 0.5
      %v538 = vtanh.pop %v531
      %540 = vrot.lane.b32.xlu0 %v459, 32
      %v541 = vpop.permute.xlu0 %540
      %v543 = vmul.f32 %v537, %v541
      %545 = vrot.lane.b32.xlu0 %v538, 32
      %v546 = vpop.permute.xlu0 %545
      %v548 = vmul.f32 %v537, %v546
      %550 = vrot.lane.b32.xlu0 %v548, 32
      %v551 = vpop.permute.xlu0 %550
      %v553 = vadd.f32 %v543, %v551
      %v554 = vtanh.pop %v553
      %556 = vrot.lane.b32.xlu0 %v554, 32
      %v557 = vpop.permute.xlu0 %556
      %v559 = vmul.f32 %v537, %v557
      %561 = vrot.lane.b32.xlu0 %v559, 64
      %v562 = vpop.permute.xlu0 %561
      %564 = vst.msk [vmem:[%s289] sm:$0xff] %vm310, %v562
      %s565 = scalar_lea.vmem [#allocation2], 8
      %v566 = vld [vmem:[%s565] sm:$0xff]
      %v567 = vsel %vm310, %v562, 0
      %569 = vmatprep.subr.mxu0 0.0
      %570 = vmatpush1.msra.mxu0 %v454
      %571 = vmatprep.subr.mxu0 0.0
      %572 = vmatpush1.msra.mxu0 %v455
      %573 = vmatprep.subr.mxu0 0.0
      %574 = vmatpush1.msra.mxu0 %v456
      %575 = vmatprep.subr.mxu0 0.0
      %576 = vmatpush1.msra.mxu0 %v457
      %577 = vmatprep.subr.mxu0 0.0
      %578 = vmatpush1.msra.mxu0 0.0
      %579 = vmatprep.subr.mxu0 0.0
      %580 = vmatpush1.msra.mxu0 0.0
      %581 = vmatprep.subr.mxu0 0.0
      %582 = vmatpush1.msra.mxu0 0.0
      %583 = vmatprep.subr.mxu0 0.0
      %584 = vmatpush1.msra.mxu0 0.0
      %585 = vmatprep.subr.mxu0 0.0
      %586 = vmatpush1.msra.mxu0 0.0
      %587 = vmatprep.subr.mxu0 0.0
      %588 = vmatpush1.msra.mxu0 0.0
      %589 = vmatprep.subr.mxu0 0.0
      %590 = vmatpush1.msra.mxu0 0.0
      %591 = vmatprep.subr.mxu0 0.0
      %592 = vmatpush1.msra.mxu0 0.0
      %593 = vmatprep.subr.mxu0 0.0
      %594 = vmatpush1.msra.mxu0 0.0
      %595 = vmatprep.subr.mxu0 0.0
      %596 = vmatpush1.msra.mxu0 0.0
      %597 = vmatprep.subr.mxu0 0.0
      %598 = vmatpush1.msra.mxu0 0.0
      %599 = vmatprep.subr.mxu0 0.0
      %600 = vmatpush1.msra.mxu0 0.0
      %601 = vmatprep.subr.mxu0 0.0
      %602 = vmatpush1.msra.mxu0 0.0
      %603 = vmatprep.subr.mxu0 0.0
      %604 = vmatpush1.msra.mxu0 0.0
      %605 = vmatprep.subr.mxu0 0.0
      %606 = vmatpush1.msra.mxu0 0.0
      %607 = vmatprep.subr.mxu0 0.0
      %608 = vmatpush1.msra.mxu0 0.0
      %609 = vmatprep.subr.mxu0 0.0
      %610 = vmatpush1.msra.mxu0 0.0
      %611 = vmatprep.subr.mxu0 0.0
      %612 = vmatpush1.msra.mxu0 0.0
      %613 = vmatprep.subr.mxu0 0.0
      %614 = vmatpush1.msra.mxu0 0.0
      %615 = vmatprep.subr.mxu0 0.0
      %616 = vmatpush1.msra.mxu0 0.0
      %617 = vmatprep.subr.mxu0 0.0
      %618 = vmatpush1.msra.mxu0 0.0
      %619 = vmatprep.subr.mxu0 0.0
      %620 = vmatpush1.msra.mxu0 0.0
      %621 = vmatprep.subr.mxu0 0.0
      %622 = vmatpush1.msra.mxu0 0.0
      %623 = vmatprep.subr.mxu0 0.0
      %624 = vmatpush1.msra.mxu0 0.0
      %625 = vmatprep.subr.mxu0 0.0
      %626 = vmatpush1.msra.mxu0 0.0
      %627 = vmatprep.subr.mxu0 0.0
      %628 = vmatpush1.msra.mxu0 0.0
      %629 = vmatprep.subr.mxu0 0.0
      %630 = vmatpush1.msra.mxu0 0.0
      %631 = vmatprep.subr.mxu0 0.0
      %632 = vmatpush1.msra.mxu0 0.0
      %633 = vmatprep.mubr.f32.mxu0 0.0
      %634 = vmatmul.mubr.f32.gmra.mrb[0].mxu0 %v567
      %v635 = vpop.f32.mrb[0].mxu0
      %v636 = vadd.f32 %v566, %v635
      %v637 = vpop.f32.mrb[0].mxu0
      %638 = vdwg.mxu0
      %v639 = vmul.f32 %v636, 0.5
      %v640 = vtanh.pop %v639
      %v641 = vmul.f32 %v640, 0.5
      %v642 = vadd.f32 %v641, 0.5
      %v643 = vtanh.pop %v636
      %v644 = vmul.f32 %v642, %v553
      %646 = vrot.lane.b32.xlu0 %v643, 32
      %v647 = vpop.permute.xlu0 %646
      %v649 = vmul.f32 %v642, %v647
      %651 = vrot.lane.b32.xlu0 %v649, 32
      %v652 = vpop.permute.xlu0 %651
      %v654 = vadd.f32 %v644, %v652
      %v655 = vtanh.pop %v654
      %657 = vrot.lane.b32.xlu0 %v655, 32
      %v658 = vpop.permute.xlu0 %657
      %v660 = vmul.f32 %v642, %v658
      %662 = vrot.lane.b32.xlu0 %v660, 64
      %v663 = vpop.permute.xlu0 %662
      %s665 = scalar_lea.vmem %s289, 8
      %666 = vst.msk [vmem:[%s665] sm:$0xff] %vm310, %v663
      %s667 = scalar_lea.vmem [#allocation2], 16
      %v668 = vld [vmem:[%s667] sm:$0xff]
      %v669 = vsel %vm310, %v663, 0
      %671 = vmatprep.subr.mxu0 0.0
      %672 = vmatpush1.msra.mxu0 %v454
      %673 = vmatprep.subr.mxu0 0.0
      %674 = vmatpush1.msra.mxu0 %v455
      %675 = vmatprep.subr.mxu0 0.0
      %676 = vmatpush1.msra.mxu0 %v456
      %677 = vmatprep.subr.mxu0 0.0
      %678 = vmatpush1.msra.mxu0 %v457
      %679 = vmatprep.subr.mxu0 0.0
      %680 = vmatpush1.msra.mxu0 0.0
      %681 = vmatprep.subr.mxu0 0.0
      %682 = vmatpush1.msra.mxu0 0.0
      %683 = vmatprep.subr.mxu0 0.0
      %684 = vmatpush1.msra.mxu0 0.0
      %685 = vmatprep.subr.mxu0 0.0
      %686 = vmatpush1.msra.mxu0 0.0
      %687 = vmatprep.subr.mxu0 0.0
      %688 = vmatpush1.msra.mxu0 0.0
      %689 = vmatprep.subr.mxu0 0.0
      %690 = vmatpush1.msra.mxu0 0.0
      %691 = vmatprep.subr.mxu0 0.0
      %692 = vmatpush1.msra.mxu0 0.0
      %693 = vmatprep.subr.mxu0 0.0
      %694 = vmatpush1.msra.mxu0 0.0
      %695 = vmatprep.subr.mxu0 0.0
      %696 = vmatpush1.msra.mxu0 0.0
      %697 = vmatprep.subr.mxu0 0.0
      %698 = vmatpush1.msra.mxu0 0.0
      %699 = vmatprep.subr.mxu0 0.0
      %700 = vmatpush1.msra.mxu0 0.0
      %701 = vmatprep.subr.mxu0 0.0
      %702 = vmatpush1.msra.mxu0 0.0
      %703 = vmatprep.subr.mxu0 0.0
      %704 = vmatpush1.msra.mxu0 0.0
      %705 = vmatprep.subr.mxu0 0.0
      %706 = vmatpush1.msra.mxu0 0.0
      %707 = vmatprep.subr.mxu0 0.0
      %708 = vmatpush1.msra.mxu0 0.0
      %709 = vmatprep.subr.mxu0 0.0
      %710 = vmatpush1.msra.mxu0 0.0
      %711 = vmatprep.subr.mxu0 0.0
      %712 = vmatpush1.msra.mxu0 0.0
      %713 = vmatprep.subr.mxu0 0.0
      %714 = vmatpush1.msra.mxu0 0.0
      %715 = vmatprep.subr.mxu0 0.0
      %716 = vmatpush1.msra.mxu0 0.0
      %717 = vmatprep.subr.mxu0 0.0
      %718 = vmatpush1.msra.mxu0 0.0
      %719 = vmatprep.subr.mxu0 0.0
      %720 = vmatpush1.msra.mxu0 0.0
      %721 = vmatprep.subr.mxu0 0.0
      %722 = vmatpush1.msra.mxu0 0.0
      %723 = vmatprep.subr.mxu0 0.0
      %724 = vmatpush1.msra.mxu0 0.0
      %725 = vmatprep.subr.mxu0 0.0
      %726 = vmatpush1.msra.mxu0 0.0
      %727 = vmatprep.subr.mxu0 0.0
      %728 = vmatpush1.msra.mxu0 0.0
      %729 = vmatprep.subr.mxu0 0.0
      %730 = vmatpush1.msra.mxu0 0.0
      %731 = vmatprep.subr.mxu0 0.0
      %732 = vmatpush1.msra.mxu0 0.0
      %733 = vmatprep.subr.mxu0 0.0
      %734 = vmatpush1.msra.mxu0 0.0
      %735 = vmatprep.mubr.f32.mxu0 0.0
      %736 = vmatmul.mubr.f32.gmra.mrb[0].mxu0 %v669
      %v737 = vpop.f32.mrb[0].mxu0
      %v738 = vadd.f32 %v668, %v737
      %v739 = vpop.f32.mrb[0].mxu0
      %740 = vdwg.mxu0
      %v741 = vmul.f32 %v738, 0.5
      %v742 = vtanh.pop %v741
      %v743 = vmul.f32 %v742, 0.5
      %v744 = vadd.f32 %v743, 0.5
      %v745 = vtanh.pop %v738
      %v746 = vmul.f32 %v744, %v654
      %748 = vrot.lane.b32.xlu0 %v745, 32
      %v749 = vpop.permute.xlu0 %748
      %v751 = vmul.f32 %v744, %v749
      %753 = vrot.lane.b32.xlu0 %v751, 32
      %v754 = vpop.permute.xlu0 %753
      %v756 = vadd.f32 %v746, %v754
      %v757 = vtanh.pop %v756
      %759 = vrot.lane.b32.xlu0 %v757, 32
      %v760 = vpop.permute.xlu0 %759
      %v762 = vmul.f32 %v744, %v760
      %764 = vrot.lane.b32.xlu0 %v762, 64
      %v765 = vpop.permute.xlu0 %764
      %s767 = scalar_lea.vmem %s289, 16
      %768 = vst.msk [vmem:[%s767] sm:$0xff] %vm310, %v765
      %s769 = scalar_lea.vmem [#allocation2], 24
      %v770 = vld [vmem:[%s769] sm:$0xff]
      %v771 = vsel %vm310, %v765, 0
      %773 = vmatprep.subr.mxu0 0.0
      %774 = vmatpush1.msra.mxu0 %v454
      %775 = vmatprep.subr.mxu0 0.0
      %776 = vmatpush1.msra.mxu0 %v455
      %777 = vmatprep.subr.mxu0 0.0
      %778 = vmatpush1.msra.mxu0 %v456
      %779 = vmatprep.subr.mxu0 0.0
      %780 = vmatpush1.msra.mxu0 %v457
      %781 = vmatprep.subr.mxu0 0.0
      %782 = vmatpush1.msra.mxu0 0.0
      %783 = vmatprep.subr.mxu0 0.0
      %784 = vmatpush1.msra.mxu0 0.0
      %785 = vmatprep.subr.mxu0 0.0
      %786 = vmatpush1.msra.mxu0 0.0
      %787 = vmatprep.subr.mxu0 0.0
      %788 = vmatpush1.msra.mxu0 0.0
      %789 = vmatprep.subr.mxu0 0.0
      %790 = vmatpush1.msra.mxu0 0.0
      %791 = vmatprep.subr.mxu0 0.0
      %792 = vmatpush1.msra.mxu0 0.0
      %793 = vmatprep.subr.mxu0 0.0
      %794 = vmatpush1.msra.mxu0 0.0
      %795 = vmatprep.subr.mxu0 0.0
      %796 = vmatpush1.msra.mxu0 0.0
      %797 = vmatprep.subr.mxu0 0.0
      %798 = vmatpush1.msra.mxu0 0.0
      %799 = vmatprep.subr.mxu0 0.0
      %800 = vmatpush1.msra.mxu0 0.0
      %801 = vmatprep.subr.mxu0 0.0
      %802 = vmatpush1.msra.mxu0 0.0
      %803 = vmatprep.subr.mxu0 0.0
      %804 = vmatpush1.msra.mxu0 0.0
      %805 = vmatprep.subr.mxu0 0.0
      %806 = vmatpush1.msra.mxu0 0.0
      %807 = vmatprep.subr.mxu0 0.0
      %808 = vmatpush1.msra.mxu0 0.0
      %809 = vmatprep.subr.mxu0 0.0
      %810 = vmatpush1.msra.mxu0 0.0
      %811 = vmatprep.subr.mxu0 0.0
      %812 = vmatpush1.msra.mxu0 0.0
      %813 = vmatprep.subr.mxu0 0.0
      %814 = vmatpush1.msra.mxu0 0.0
      %815 = vmatprep.subr.mxu0 0.0
      %816 = vmatpush1.msra.mxu0 0.0
      %817 = vmatprep.subr.mxu0 0.0
      %818 = vmatpush1.msra.mxu0 0.0
      %819 = vmatprep.subr.mxu0 0.0
      %820 = vmatpush1.msra.mxu0 0.0
      %821 = vmatprep.subr.mxu0 0.0
      %822 = vmatpush1.msra.mxu0 0.0
      %823 = vmatprep.subr.mxu0 0.0
      %824 = vmatpush1.msra.mxu0 0.0
      %825 = vmatprep.subr.mxu0 0.0
      %826 = vmatpush1.msra.mxu0 0.0
      %827 = vmatprep.subr.mxu0 0.0
      %828 = vmatpush1.msra.mxu0 0.0
      %829 = vmatprep.subr.mxu0 0.0
      %830 = vmatpush1.msra.mxu0 0.0
      %831 = vmatprep.subr.mxu0 0.0
      %832 = vmatpush1.msra.mxu0 0.0
      %833 = vmatprep.subr.mxu0 0.0
      %834 = vmatpush1.msra.mxu0 0.0
      %835 = vmatprep.subr.mxu0 0.0
      %836 = vmatpush1.msra.mxu0 0.0
      %837 = vmatprep.mubr.f32.mxu0 0.0
      %838 = vmatmul.mubr.f32.gmra.mrb[0].mxu0 %v771
      %v839 = vpop.f32.mrb[0].mxu0
      %v840 = vadd.f32 %v770, %v839
      %v841 = vpop.f32.mrb[0].mxu0
      %842 = vdwg.mxu0
      %v843 = vmul.f32 %v840, 0.5
      %v844 = vtanh.pop %v843
      %v845 = vmul.f32 %v844, 0.5
      %v846 = vadd.f32 %v845, 0.5
      %v847 = vtanh.pop %v840
      %v848 = vmul.f32 %v846, %v756
      %850 = vrot.lane.b32.xlu0 %v847, 32
      %v851 = vpop.permute.xlu0 %850
      %v853 = vmul.f32 %v846, %v851
      %855 = vrot.lane.b32.xlu0 %v853, 32
      %v856 = vpop.permute.xlu0 %855
      %v858 = vadd.f32 %v848, %v856
      %v859 = vtanh.pop %v858
      %861 = vrot.lane.b32.xlu0 %v859, 32
      %v862 = vpop.permute.xlu0 %861
      %v864 = vmul.f32 %v846, %v862
      %866 = vrot.lane.b32.xlu0 %v864, 64
      %v867 = vpop.permute.xlu0 %866
      %s869 = scalar_lea.vmem %s289, 24
      %870 = vst.msk [vmem:[%s869] sm:$0xff] %vm310, %v867
      %s871 = scalar_lea.vmem [#allocation2], 32
      %v872 = vld [vmem:[%s871] sm:$0xff]
      %v873 = vsel %vm310, %v867, 0
      %875 = vmatprep.subr.mxu0 0.0
      %876 = vmatpush1.msra.mxu0 %v454
      %877 = vmatprep.subr.mxu0 0.0
      %878 = vmatpush1.msra.mxu0 %v455
      %879 = vmatprep.subr.mxu0 0.0
      %880 = vmatpush1.msra.mxu0 %v456
      %881 = vmatprep.subr.mxu0 0.0
      %882 = vmatpush1.msra.mxu0 %v457
      %883 = vmatprep.subr.mxu0 0.0
      %884 = vmatpush1.msra.mxu0 0.0
      %885 = vmatprep.subr.mxu0 0.0
      %886 = vmatpush1.msra.mxu0 0.0
      %887 = vmatprep.subr.mxu0 0.0
      %888 = vmatpush1.msra.mxu0 0.0
      %889 = vmatprep.subr.mxu0 0.0
      %890 = vmatpush1.msra.mxu0 0.0
      %891 = vmatprep.subr.mxu0 0.0
      %892 = vmatpush1.msra.mxu0 0.0
      %893 = vmatprep.subr.mxu0 0.0
      %894 = vmatpush1.msra.mxu0 0.0
      %895 = vmatprep.subr.mxu0 0.0
      %896 = vmatpush1.msra.mxu0 0.0
      %897 = vmatprep.subr.mxu0 0.0
      %898 = vmatpush1.msra.mxu0 0.0
      %899 = vmatprep.subr.mxu0 0.0
      %900 = vmatpush1.msra.mxu0 0.0
      %901 = vmatprep.subr.mxu0 0.0
      %902 = vmatpush1.msra.mxu0 0.0
      %903 = vmatprep.subr.mxu0 0.0
      %904 = vmatpush1.msra.mxu0 0.0
      %905 = vmatprep.subr.mxu0 0.0
      %906 = vmatpush1.msra.mxu0 0.0
      %907 = vmatprep.subr.mxu0 0.0
      %908 = vmatpush1.msra.mxu0 0.0
      %909 = vmatprep.subr.mxu0 0.0
      %910 = vmatpush1.msra.mxu0 0.0
      %911 = vmatprep.subr.mxu0 0.0
      %912 = vmatpush1.msra.mxu0 0.0
      %913 = vmatprep.subr.mxu0 0.0
      %914 = vmatpush1.msra.mxu0 0.0
      %915 = vmatprep.subr.mxu0 0.0
      %916 = vmatpush1.msra.mxu0 0.0
      %917 = vmatprep.subr.mxu0 0.0
      %918 = vmatpush1.msra.mxu0 0.0
      %919 = vmatprep.subr.mxu0 0.0
      %920 = vmatpush1.msra.mxu0 0.0
      %921 = vmatprep.subr.mxu0 0.0
      %922 = vmatpush1.msra.mxu0 0.0
      %923 = vmatprep.subr.mxu0 0.0
      %924 = vmatpush1.msra.mxu0 0.0
      %925 = vmatprep.subr.mxu0 0.0
      %926 = vmatpush1.msra.mxu0 0.0
      %927 = vmatprep.subr.mxu0 0.0
      %928 = vmatpush1.msra.mxu0 0.0
      %929 = vmatprep.subr.mxu0 0.0
      %930 = vmatpush1.msra.mxu0 0.0
      %931 = vmatprep.subr.mxu0 0.0
      %932 = vmatpush1.msra.mxu0 0.0
      %933 = vmatprep.subr.mxu0 0.0
      %934 = vmatpush1.msra.mxu0 0.0
      %935 = vmatprep.subr.mxu0 0.0
      %936 = vmatpush1.msra.mxu0 0.0
      %937 = vmatprep.subr.mxu0 0.0
      %938 = vmatpush1.msra.mxu0 0.0
      %939 = vmatprep.mubr.f32.mxu0 0.0
      %940 = vmatmul.mubr.f32.gmra.mrb[0].mxu0 %v873
      %v941 = vpop.f32.mrb[0].mxu0
      %v942 = vadd.f32 %v872, %v941
      %v943 = vpop.f32.mrb[0].mxu0
      %944 = vdwg.mxu0
      %v945 = vmul.f32 %v942, 0.5
      %v946 = vtanh.pop %v945
      %v947 = vmul.f32 %v946, 0.5
      %v948 = vadd.f32 %v947, 0.5
      %v949 = vtanh.pop %v942
      %v950 = vmul.f32 %v948, %v858
      %952 = vrot.lane.b32.xlu0 %v949, 32
      %v953 = vpop.permute.xlu0 %952
      %v955 = vmul.f32 %v948, %v953
      %957 = vrot.lane.b32.xlu0 %v955, 32
      %v958 = vpop.permute.xlu0 %957
      %v960 = vadd.f32 %v950, %v958
      %v961 = vtanh.pop %v960
      %963 = vrot.lane.b32.xlu0 %v961, 32
      %v964 = vpop.permute.xlu0 %963
      %v966 = vmul.f32 %v948, %v964
      %968 = vrot.lane.b32.xlu0 %v966, 64
      %v969 = vpop.permute.xlu0 %968
      %s971 = scalar_lea.vmem %s289, 32
      %972 = vst.msk [vmem:[%s971] sm:$0xff] %vm310, %v969
      %s973 = scalar_lea.vmem [#allocation2], 40
      %v974 = vld [vmem:[%s973] sm:$0xff]
      %v975 = vsel %vm310, %v969, 0
      %977 = vmatprep.subr.mxu0 0.0
      %978 = vmatpush1.msra.mxu0 %v454
      %979 = vmatprep.subr.mxu0 0.0
      %980 = vmatpush1.msra.mxu0 %v455
      %981 = vmatprep.subr.mxu0 0.0
      %982 = vmatpush1.msra.mxu0 %v456
      %983 = vmatprep.subr.mxu0 0.0
      %984 = vmatpush1.msra.mxu0 %v457
      %985 = vmatprep.subr.mxu0 0.0
      %986 = vmatpush1.msra.mxu0 0.0
      %987 = vmatprep.subr.mxu0 0.0
      %988 = vmatpush1.msra.mxu0 0.0
      %989 = vmatprep.subr.mxu0 0.0
      %990 = vmatpush1.msra.mxu0 0.0
      %991 = vmatprep.subr.mxu0 0.0
      %992 = vmatpush1.msra.mxu0 0.0
      %993 = vmatprep.subr.mxu0 0.0
      %994 = vmatpush1.msra.mxu0 0.0
      %995 = vmatprep.subr.mxu0 0.0
      %996 = vmatpush1.msra.mxu0 0.0
      %997 = vmatprep.subr.mxu0 0.0
      %998 = vmatpush1.msra.mxu0 0.0
      %999 = vmatprep.subr.mxu0 0.0
      %1000 = vmatpush1.msra.mxu0 0.0
      %1001 = vmatprep.subr.mxu0 0.0
      %1002 = vmatpush1.msra.mxu0 0.0
      %1003 = vmatprep.subr.mxu0 0.0
      %1004 = vmatpush1.msra.mxu0 0.0
      %1005 = vmatprep.subr.mxu0 0.0
      %1006 = vmatpush1.msra.mxu0 0.0
      %1007 = vmatprep.subr.mxu0 0.0
      %1008 = vmatpush1.msra.mxu0 0.0
      %1009 = vmatprep.subr.mxu0 0.0
      %1010 = vmatpush1.msra.mxu0 0.0
      %1011 = vmatprep.subr.mxu0 0.0
      %1012 = vmatpush1.msra.mxu0 0.0
      %1013 = vmatprep.subr.mxu0 0.0
      %1014 = vmatpush1.msra.mxu0 0.0
      %1015 = vmatprep.subr.mxu0 0.0
      %1016 = vmatpush1.msra.mxu0 0.0
      %1017 = vmatprep.subr.mxu0 0.0
      %1018 = vmatpush1.msra.mxu0 0.0
      %1019 = vmatprep.subr.mxu0 0.0
      %1020 = vmatpush1.msra.mxu0 0.0
      %1021 = vmatprep.subr.mxu0 0.0
      %1022 = vmatpush1.msra.mxu0 0.0
      %1023 = vmatprep.subr.mxu0 0.0
      %1024 = vmatpush1.msra.mxu0 0.0
      %1025 = vmatprep.subr.mxu0 0.0
      %1026 = vmatpush1.msra.mxu0 0.0
      %1027 = vmatprep.subr.mxu0 0.0
      %1028 = vmatpush1.msra.mxu0 0.0
      %1029 = vmatprep.subr.mxu0 0.0
      %1030 = vmatpush1.msra.mxu0 0.0
      %1031 = vmatprep.subr.mxu0 0.0
      %1032 = vmatpush1.msra.mxu0 0.0
      %1033 = vmatprep.subr.mxu0 0.0
      %1034 = vmatpush1.msra.mxu0 0.0
      %1035 = vmatprep.subr.mxu0 0.0
      %1036 = vmatpush1.msra.mxu0 0.0
      %1037 = vmatprep.subr.mxu0 0.0
      %1038 = vmatpush1.msra.mxu0 0.0
      %1039 = vmatprep.subr.mxu0 0.0
      %1040 = vmatpush1.msra.mxu0 0.0
      %1041 = vmatprep.mubr.f32.mxu0 0.0
      %1042 = vmatmul.mubr.f32.gmra.mrb[0].mxu0 %v975
      %v1043 = vpop.f32.mrb[0].mxu0
      %v1044 = vadd.f32 %v974, %v1043
      %v1045 = vpop.f32.mrb[0].mxu0
      %1046 = vdwg.mxu0
      %v1047 = vmul.f32 %v1044, 0.5
      %v1048 = vtanh.pop %v1047
      %v1049 = vmul.f32 %v1048, 0.5
      %v1050 = vadd.f32 %v1049, 0.5
      %v1051 = vtanh.pop %v1044
      %v1052 = vmul.f32 %v1050, %v960
      %1054 = vrot.lane.b32.xlu0 %v1051, 32
      %v1055 = vpop.permute.xlu0 %1054
      %v1057 = vmul.f32 %v1050, %v1055
      %1059 = vrot.lane.b32.xlu0 %v1057, 32
      %v1060 = vpop.permute.xlu0 %1059
      %v1062 = vadd.f32 %v1052, %v1060
      %v1063 = vtanh.pop %v1062
      %1065 = vrot.lane.b32.xlu0 %v1063, 32
      %v1066 = vpop.permute.xlu0 %1065
      %v1068 = vmul.f32 %v1050, %v1066
      %1070 = vrot.lane.b32.xlu0 %v1068, 64
      %v1071 = vpop.permute.xlu0 %1070
      %s1073 = scalar_lea.vmem %s289, 40
      %1074 = vst.msk [vmem:[%s1073] sm:$0xff] %vm310, %v1071
      %s1075 = scalar_lea.vmem [#allocation2], 48
      %v1076 = vld [vmem:[%s1075] sm:$0xff]
      %v1077 = vsel %vm310, %v1071, 0
      %1079 = vmatprep.subr.mxu0 0.0
      %1080 = vmatpush1.msra.mxu0 %v454
      %1081 = vmatprep.subr.mxu0 0.0
      %1082 = vmatpush1.msra.mxu0 %v455
      %1083 = vmatprep.subr.mxu0 0.0
      %1084 = vmatpush1.msra.mxu0 %v456
      %1085 = vmatprep.subr.mxu0 0.0
      %1086 = vmatpush1.msra.mxu0 %v457
      %1087 = vmatprep.subr.mxu0 0.0
      %1088 = vmatpush1.msra.mxu0 0.0
      %1089 = vmatprep.subr.mxu0 0.0
      %1090 = vmatpush1.msra.mxu0 0.0
      %1091 = vmatprep.subr.mxu0 0.0
      %1092 = vmatpush1.msra.mxu0 0.0
      %1093 = vmatprep.subr.mxu0 0.0
      %1094 = vmatpush1.msra.mxu0 0.0
      %1095 = vmatprep.subr.mxu0 0.0
      %1096 = vmatpush1.msra.mxu0 0.0
      %1097 = vmatprep.subr.mxu0 0.0
      %1098 = vmatpush1.msra.mxu0 0.0
      %1099 = vmatprep.subr.mxu0 0.0
      %1100 = vmatpush1.msra.mxu0 0.0
      %1101 = vmatprep.subr.mxu0 0.0
      %1102 = vmatpush1.msra.mxu0 0.0
      %1103 = vmatprep.subr.mxu0 0.0
      %1104 = vmatpush1.msra.mxu0 0.0
      %1105 = vmatprep.subr.mxu0 0.0
      %1106 = vmatpush1.msra.mxu0 0.0
      %1107 = vmatprep.subr.mxu0 0.0
      %1108 = vmatpush1.msra.mxu0 0.0
      %1109 = vmatprep.subr.mxu0 0.0
      %1110 = vmatpush1.msra.mxu0 0.0
      %1111 = vmatprep.subr.mxu0 0.0
      %1112 = vmatpush1.msra.mxu0 0.0
      %1113 = vmatprep.subr.mxu0 0.0
      %1114 = vmatpush1.msra.mxu0 0.0
      %1115 = vmatprep.subr.mxu0 0.0
      %1116 = vmatpush1.msra.mxu0 0.0
      %1117 = vmatprep.subr.mxu0 0.0
      %1118 = vmatpush1.msra.mxu0 0.0
      %1119 = vmatprep.subr.mxu0 0.0
      %1120 = vmatpush1.msra.mxu0 0.0
      %1121 = vmatprep.subr.mxu0 0.0
      %1122 = vmatpush1.msra.mxu0 0.0
      %1123 = vmatprep.subr.mxu0 0.0
      %1124 = vmatpush1.msra.mxu0 0.0
      %1125 = vmatprep.subr.mxu0 0.0
      %1126 = vmatpush1.msra.mxu0 0.0
      %1127 = vmatprep.subr.mxu0 0.0
      %1128 = vmatpush1.msra.mxu0 0.0
      %1129 = vmatprep.subr.mxu0 0.0
      %1130 = vmatpush1.msra.mxu0 0.0
      %1131 = vmatprep.subr.mxu0 0.0
      %1132 = vmatpush1.msra.mxu0 0.0
      %1133 = vmatprep.subr.mxu0 0.0
      %1134 = vmatpush1.msra.mxu0 0.0
      %1135 = vmatprep.subr.mxu0 0.0
      %1136 = vmatpush1.msra.mxu0 0.0
      %1137 = vmatprep.subr.mxu0 0.0
      %1138 = vmatpush1.msra.mxu0 0.0
      %1139 = vmatprep.subr.mxu0 0.0
      %1140 = vmatpush1.msra.mxu0 0.0
      %1141 = vmatprep.subr.mxu0 0.0
      %1142 = vmatpush1.msra.mxu0 0.0
      %1143 = vmatprep.mubr.f32.mxu0 0.0
      %1144 = vmatmul.mubr.f32.gmra.mrb[0].mxu0 %v1077
      %v1145 = vpop.f32.mrb[0].mxu0
      %v1146 = vadd.f32 %v1076, %v1145
      %v1147 = vpop.f32.mrb[0].mxu0
      %1148 = vdwg.mxu0
      %v1149 = vmul.f32 %v1146, 0.5
      %v1150 = vtanh.pop %v1149
      %v1151 = vmul.f32 %v1150, 0.5
      %v1152 = vadd.f32 %v1151, 0.5
      %v1153 = vtanh.pop %v1146
      %v1154 = vmul.f32 %v1152, %v1062
      %1156 = vrot.lane.b32.xlu0 %v1153, 32
      %v1157 = vpop.permute.xlu0 %1156
      %v1159 = vmul.f32 %v1152, %v1157
      %1161 = vrot.lane.b32.xlu0 %v1159, 32
      %v1162 = vpop.permute.xlu0 %1161
      %v1164 = vadd.f32 %v1154, %v1162
      %v1165 = vtanh.pop %v1164
      %1167 = vrot.lane.b32.xlu0 %v1165, 32
      %v1168 = vpop.permute.xlu0 %1167
      %v1170 = vmul.f32 %v1152, %v1168
      %1172 = vrot.lane.b32.xlu0 %v1170, 64
      %v1173 = vpop.permute.xlu0 %1172
      %s1175 = scalar_lea.vmem %s289, 48
      %1176 = vst.msk [vmem:[%s1175] sm:$0xff] %vm310, %v1173
      %s1177 = scalar_lea.vmem [#allocation2], 56
      %v1178 = vld [vmem:[%s1177] sm:$0xff]
      %v1179 = vsel %vm310, %v1173, 0
      %1181 = vmatprep.subr.mxu0 0.0
      %1182 = vmatpush1.msra.mxu0 %v454
      %1183 = vmatprep.subr.mxu0 0.0
      %1184 = vmatpush1.msra.mxu0 %v455
      %1185 = vmatprep.subr.mxu0 0.0
      %1186 = vmatpush1.msra.mxu0 %v456
      %1187 = vmatprep.subr.mxu0 0.0
      %1188 = vmatpush1.msra.mxu0 %v457
      %1189 = vmatprep.subr.mxu0 0.0
      %1190 = vmatpush1.msra.mxu0 0.0
      %1191 = vmatprep.subr.mxu0 0.0
      %1192 = vmatpush1.msra.mxu0 0.0
      %1193 = vmatprep.subr.mxu0 0.0
      %1194 = vmatpush1.msra.mxu0 0.0
      %1195 = vmatprep.subr.mxu0 0.0
      %1196 = vmatpush1.msra.mxu0 0.0
      %1197 = vmatprep.subr.mxu0 0.0
      %1198 = vmatpush1.msra.mxu0 0.0
      %1199 = vmatprep.subr.mxu0 0.0
      %1200 = vmatpush1.msra.mxu0 0.0
      %1201 = vmatprep.subr.mxu0 0.0
      %1202 = vmatpush1.msra.mxu0 0.0
      %1203 = vmatprep.subr.mxu0 0.0
      %1204 = vmatpush1.msra.mxu0 0.0
      %1205 = vmatprep.subr.mxu0 0.0
      %1206 = vmatpush1.msra.mxu0 0.0
      %1207 = vmatprep.subr.mxu0 0.0
      %1208 = vmatpush1.msra.mxu0 0.0
      %1209 = vmatprep.subr.mxu0 0.0
      %1210 = vmatpush1.msra.mxu0 0.0
      %1211 = vmatprep.subr.mxu0 0.0
      %1212 = vmatpush1.msra.mxu0 0.0
      %1213 = vmatprep.subr.mxu0 0.0
      %1214 = vmatpush1.msra.mxu0 0.0
      %1215 = vmatprep.subr.mxu0 0.0
      %1216 = vmatpush1.msra.mxu0 0.0
      %1217 = vmatprep.subr.mxu0 0.0
      %1218 = vmatpush1.msra.mxu0 0.0
      %1219 = vmatprep.subr.mxu0 0.0
      %1220 = vmatpush1.msra.mxu0 0.0
      %1221 = vmatprep.subr.mxu0 0.0
      %1222 = vmatpush1.msra.mxu0 0.0
      %1223 = vmatprep.subr.mxu0 0.0
      %1224 = vmatpush1.msra.mxu0 0.0
      %1225 = vmatprep.subr.mxu0 0.0
      %1226 = vmatpush1.msra.mxu0 0.0
      %1227 = vmatprep.subr.mxu0 0.0
      %1228 = vmatpush1.msra.mxu0 0.0
      %1229 = vmatprep.subr.mxu0 0.0
      %1230 = vmatpush1.msra.mxu0 0.0
      %1231 = vmatprep.subr.mxu0 0.0
      %1232 = vmatpush1.msra.mxu0 0.0
      %1233 = vmatprep.subr.mxu0 0.0
      %1234 = vmatpush1.msra.mxu0 0.0
      %1235 = vmatprep.subr.mxu0 0.0
      %1236 = vmatpush1.msra.mxu0 0.0
      %1237 = vmatprep.subr.mxu0 0.0
      %1238 = vmatpush1.msra.mxu0 0.0
      %1239 = vmatprep.subr.mxu0 0.0
      %1240 = vmatpush1.msra.mxu0 0.0
      %1241 = vmatprep.subr.mxu0 0.0
      %1242 = vmatpush1.msra.mxu0 0.0
      %1243 = vmatprep.subr.mxu0 0.0
      %1244 = vmatpush1.msra.mxu0 0.0
      %1245 = vmatprep.mubr.f32.mxu0 0.0
      %1246 = vmatmul.mubr.f32.gmra.mrb[0].mxu0 %v1179
      %v1247 = vpop.f32.mrb[0].mxu0
      %v1248 = vadd.f32 %v1178, %v1247
      %v1249 = vpop.f32.mrb[0].mxu0
      %1250 = vdwg.mxu0
      %v1251 = vmul.f32 %v1248, 0.5
      %v1252 = vtanh.pop %v1251
      %v1253 = vmul.f32 %v1252, 0.5
      %v1254 = vadd.f32 %v1253, 0.5
      %v1255 = vtanh.pop %v1248
      %v1256 = vmul.f32 %v1254, %v1164
      %1258 = vrot.lane.b32.xlu0 %v1255, 32
      %v1259 = vpop.permute.xlu0 %1258
      %v1261 = vmul.f32 %v1254, %v1259
      %1263 = vrot.lane.b32.xlu0 %v1261, 32
      %v1264 = vpop.permute.xlu0 %1263
      %v1266 = vadd.f32 %v1256, %v1264
      %v1267 = vtanh.pop %v1266
      %1269 = vrot.lane.b32.xlu0 %v1267, 32
      %v1270 = vpop.permute.xlu0 %1269
      %v1272 = vmul.f32 %v1254, %v1270
      %1274 = vrot.lane.b32.xlu0 %v1272, 64
      %v1275 = vpop.permute.xlu0 %1274
      %s1277 = scalar_lea.vmem %s289, 56
      %1278 = vst.msk [vmem:[%s1277] sm:$0xff] %vm310, %v1275
      %1279 = vst.msk [vmem:[#allocation3] sm:$0xff] %vm310, %v1275
      %1281 = vrot.lane.b32.xlu0 %v1266, 96
      %v1282 = vpop.permute.xlu0 %1281
      %1284 = vst.msk [vmem:[#allocation4] sm:$0xff] %vm310, %v1282
      %s1285 = smul.u32 8, %s20
      %p1286 = scmp.lt.s32.totalorder %s19, 1
      %s1287 = scalar_select %p1286, %s19, 1
      %p1288 = scmp.lt.s32.totalorder %s1285, 7
      %s1289 = scalar_select %p1288, %s1285, 7
      %s1290 = smul.addr %s1287, 8
      %s1291 = sadd.s32 %s1289, %s1290
      %s1292 = smul.addr %s1291, 8
      %s1293 = scalar_lea.vmem %s4, %s1292
      // Predicated region
      $region41: #{encoder_forward.2} parent=35 // pred_check
        %p1294 = pneg %p153
      $region42: #{encoder_forward.2} parent=35 // pred_check_branch
        %1296 = sbr.rel (%p1294) target = $region44
      $region43: #{encoder_forward.2} parent=35 // pred_region
        %s1297 = smul.u32 8, %s20
      $region44: #{encoder_forward.2} parent=35 // pred_fallthru
        _
    $region36: #{encoder_forward.2} parent=5 // pred_fallthru
      _
    %p1298 = scmp.le.s32.totalorder 2, %s10
    // Predicated region
    $region45: #{encoder_forward.2} parent=5 // pred_check
      %p1299 = pneg %p1298
    $region46: #{encoder_forward.2} parent=5 // pred_check_branch
      %1301 = sbr.rel (%p1299) target = $region48
    $region47: #{encoder_forward.2} parent=5 // pred_region
      %s1302 = ssub.s32 %s10, 2
      // Predicated region
      $region49: #{encoder_forward.2} parent=47 // pred_check
        %p1303 = pneg %p159
      $region50: #{encoder_forward.2} parent=47 // pred_check_branch
        %1305 = sbr.rel (%p1303) target = $region52
      $region51: #{encoder_forward.2} parent=47 // pred_region
        %s1306 = smul.u32 8, %s22
        %p1307 = scmp.lt.s32.totalorder %s21, 1
        %s1308 = scalar_select %p1307, %s21, 1
        %p1309 = scmp.lt.s32.totalorder %s1306, 7
        %s1310 = scalar_select %p1309, %s1306, 7
        %s1311 = smul.addr %s1308, 8
        %s1312 = sadd.s32 %s1310, %s1311
        %s1313 = smul.addr %s1312, 8
        %s1314 = scalar_lea.vmem %s4, %s1313
      $region52: #{encoder_forward.2} parent=47 // pred_fallthru
        _
    $region48: #{encoder_forward.2} parent=5 // pred_fallthru
      _
  $region6: #{encoder_forward.2} parent=0 // loop_footer
    %s14 = sadd.s32 1, %s10
  $region7: #{encoder_forward.2} parent=0 // loop_footer_branch
    %9 = sbr.rel target = $region3
  $region8: #{encoder_forward.2} parent=0 // loop_exit
    _

</llo_original>
